<compile_context>
chip_gen: v7x
topology: tpu7x:2x2x1
jax: 0.10.0
libtpu: 0.0.40
codegen_flags: <defaults>
</compile_context>

<pallas_src>
import jax
import jax.numpy as jnp
from jax.experimental import pallas as pl
from jax.experimental.pallas import tpu as pltpu


_INV_SQRT2 = 0.7071067811865476


def _gelu_exact(h):
    """torch.nn.GELU() default (approximate='none')."""
    return 0.5 * h * (1.0 + jax.lax.erf(h * _INV_SQRT2))


# --------------------------------------------------------------------------- #
# Kernels
# --------------------------------------------------------------------------- #
def _ffn_kernel_full_n(x_ref, w1_ref, w2_ref, o_ref, acc_ref):
    """grid = (row tiles, hidden tiles); out_features untiled.

    x_ref : (tm, in_f)       row tile
    w1_ref: (th, in_f)       fc1.weight tile (torch layout)
    w2_ref: (out_f, th)      fc2.weight slab for this hidden tile
    o_ref : (tm, out_f)      output tile
    acc_ref: (tm, out_f) f32 accumulator over the hidden (k) axis
    """
    k = pl.program_id(1)

    @pl.when(k == 0)
    def _():
        acc_ref[...] = jnp.zeros_like(acc_ref)

    # h = x @ W1[k]^T  (contract last dims), f32 accumulation on the MXU.
    h = jax.lax.dot_general(
        x_ref[...], w1_ref[...],
        dimension_numbers=(((1,), (1,)), ((), ())),
        preferred_element_type=jnp.float32)
    # Exact GELU, then back to the weight dtype for the second MXU matmul.
    h = _gelu_exact(h).astype(w2_ref.dtype)
    # acc += h @ W2[:, k]^T
    acc_ref[...] += jax.lax.dot_general(
        h, w2_ref[...],
        dimension_numbers=(((1,), (1,)), ((), ())),
        preferred_element_type=jnp.float32)

    @pl.when(k == pl.num_programs(1) - 1)
    def _():
        o_ref[...] = acc_ref[...].astype(o_ref.dtype)


def _ffn_kernel_tiled_n(x_ref, w1_ref, w2_ref, o_ref, acc_ref, h_ref):
    """grid = (row tiles, out tiles, hidden tiles); fc1+GELU cached on j == 0.

    h_ref: (n_k, tm, th) cache of gelu(x @ W1^T), written once per row tile
           (on the j == 0 sweep) and reused for every other output tile.
    """
    j = pl.program_id(1)
    k = pl.program_id(2)

    @pl.when(k == 0)
    def _():
        acc_ref[...] = jnp.zeros_like(acc_ref)

    @pl.when(j == 0)
    def _():
        h = jax.lax.dot_general(
            x_ref[...], w1_ref[...],
            dimension_numbers=(((1,), (1,)), ((), ())),
            preferred_element_type=jnp.float32)
        h_ref[k] = _gelu_exact(h).astype(h_ref.dtype)

    acc_ref[...] += jax.lax.dot_general(
        h_ref[k], w2_ref[...],
        dimension_numbers=(((1,), (1,)), ((), ())),
        preferred_element_type=jnp.float32)

    @pl.when(k == pl.num_programs(2) - 1)
    def _():
        o_ref[...] = acc_ref[...].astype(o_ref.dtype)


# --------------------------------------------------------------------------- #
# Tiling helpers
# --------------------------------------------------------------------------- #
def _cdiv(a, b):
    return -(-a // b)


def _round_up(x, m):
    return _cdiv(x, m) * m


def _vmem_capacity_bytes():
    try:
        return int(pltpu.get_tpu_info().vmem_capacity_bytes)
    except Exception:
        return 64 * 1024 * 1024  # conservative (v7x per-core capacity)


def _pick_tile(dim, target, quantum=128):
    """Largest multiple of `quantum` <= target that divides `dim` (dim is a
    multiple of `quantum`), or `dim` itself when dim <= target."""
    if dim <= target:
        return dim
    t = (target // quantum) * quantum
    while t >= quantum:
        if dim % t == 0:
            return t
        t -= quantum
    return dim


def _choose_tm(m, target, align):
    """Row tile: ceil-split of m (minimal padding), >= 2 tiles when possible
    so the second v7x TensorCore has parallel work."""
    n = _cdiv(m, target)
    if n == 1 and m >= 2 * align:
        n = 2
    tm = _round_up(_cdiv(m, n), align)
    return m if tm >= m else tm  # full extent is always a legal block dim


def _plan_tiles(m, in_f, hidden_p, out_f_p, a_sz, w_sz, align, budget,
                tm_target=512, th_target=512, tn_target=512):
    """Pick (tm, th, tn, tiled_n) so the per-step VMEM footprint fits `budget`."""

    def footprint(tm, th, tn, cache_h):
        f = 2 * tm * in_f * a_sz            # x block (double buffered)
        f += 2 * th * in_f * w_sz           # W1 block
        f += 2 * tn * th * w_sz             # W2 block
        f += 2 * tm * tn * a_sz             # output block
        f += tm * tn * 4                    # f32 accumulator
        f += tm * th * (4 + w_sz)           # fc1 intermediate (f32 + cast copy)
        if cache_h:
            f += tm * hidden_p * w_sz       # gelu(fc1) cache across out tiles
        return f

    tm0 = _choose_tm(m, tm_target, align)
    th0 = _pick_tile(hidden_p, th_target)

    # Preferred plan: out_features untiled -> zero redundant fc1 work, no cache.
    tm, th = tm0, th0
    while True:
        if footprint(tm, th, out_f_p, False) <= budget:
            return tm, th, out_f_p, False
        if th > 128:
            th = _pick_tile(hidden_p, th // 2)
        elif tm > align:
            tm = max(align, _round_up(tm // 2, align))
        else:
            break

    # Fallback (very wide out_features): tile out_features + VMEM h-cache.
    tm, th = tm0, th0
    tn = _pick_tile(out_f_p, tn_target)
    while footprint(tm, th, tn, True) > budget:
        if tn > 128:
            tn = _pick_tile(out_f_p, tn // 2)
        elif th > 128:
            th = _pick_tile(hidden_p, th // 2)
        elif tm > align:
            tm = max(align, _round_up(tm // 2, align))
        else:
            break
    return tm, th, tn, True


# --------------------------------------------------------------------------- #
# Pallas wrapper
# --------------------------------------------------------------------------- #
def _ffn_2d(x2d, w1, w2):
    """x2d: (M, in_f); w1: (hidden_p, in_f); w2: (out_f_p, hidden_p) -> (M, out_f_p)."""
    m, in_f = x2d.shape
    hidden_p = w1.shape[0]
    out_f_p = w2.shape[0]

    a_sz = jnp.dtype(x2d.dtype).itemsize
    w_sz = jnp.dtype(w1.dtype).itemsize
    align = max(8, 32 // a_sz)               # sublane packing: f32 -> 8, bf16 -> 16

    cap = _vmem_capacity_bytes()
    tm, th, tn, tiled_n = _plan_tiles(
        m, in_f, hidden_p, out_f_p, a_sz, w_sz, align, budget=int(cap * 0.55))

    n_i = _cdiv(m, tm)
    n_k = hidden_p // th
    n_j = out_f_p // tn
    compute_dtype = w2.dtype

    # Tile footprint -> explicit scoped-VMEM budget (20%+ headroom).
    fp = (2 * tm * in_f * a_sz + 2 * th * in_f * w_sz + 2 * tn * th * w_sz
          + 2 * tm * tn * a_sz + tm * tn * 4 + tm * th * (4 + w_sz)
          + (tm * hidden_p * w_sz if tiled_n else 0))
    vmem_limit = int(min(0.9 * cap, max(1.5 * fp, 32 * 1024 * 1024)))

    # Honest cost estimate for the work actually executed (fc1+GELU run once).
    m_work = n_i * tm
    cost = pl.CostEstimate(
        flops=2 * m_work * hidden_p * (in_f + out_f_p),
        transcendentals=m_work * hidden_p,
        bytes_accessed=m_work * (in_f + out_f_p) * a_sz
        + n_i * (hidden_p * in_f + out_f_p * hidden_p) * w_sz,
    )

    if not tiled_n:
        grid = (n_i, n_k)
        in_specs = [
            pl.BlockSpec((tm, in_f), lambda i, k: (i, 0)),      # x rows
            pl.BlockSpec((th, in_f), lambda i, k: (k, 0)),      # W1 tile
            pl.BlockSpec((tn, th), lambda i, k: (0, k)),        # W2 slab
        ]
        out_spec = pl.BlockSpec((tm, tn), lambda i, k: (i, 0))
        scratch = [pltpu.VMEM((tm, tn), jnp.float32)]
        kernel = _ffn_kernel_full_n
        dims = ("parallel", "arbitrary")
    else:
        grid = (n_i, n_j, n_k)
        in_specs = [
            pl.BlockSpec((tm, in_f), lambda i, j, k: (i, 0)),
            # W1 is only needed on the j == 0 sweep; pin to block 0 afterwards
            # so it is not re-streamed from HBM once per output tile.
            pl.BlockSpec((th, in_f),
                         lambda i, j, k: (jnp.where(j == 0, k, 0), 0)),
            pl.BlockSpec((tn, th), lambda i, j, k: (j, k)),
        ]
        out_spec = pl.BlockSpec((tm, tn), lambda i, j, k: (i, j))
        scratch = [pltpu.VMEM((tm, tn), jnp.float32),
                   pltpu.VMEM((n_k, tm, th), compute_dtype)]
        kernel = _ffn_kernel_tiled_n
        # j must stay sequential: j > 0 reads the cache written on j == 0.
        dims = ("parallel", "arbitrary", "arbitrary")

    return pl.pallas_call(
        kernel,
        out_shape=jax.ShapeDtypeStruct((m, out_f_p), x2d.dtype),
        grid_spec=pltpu.PrefetchScalarGridSpec(
            num_scalar_prefetch=0,
            grid=grid,
            in_specs=in_specs,
            out_specs=out_spec,
            scratch_shapes=scratch,
        ),
        compiler_params=pltpu.CompilerParams(
            dimension_semantics=dims,
            vmem_limit_bytes=vmem_limit,
        ),
        cost_estimate=cost,
    )(x2d, w1, w2)


@jax.jit
def ffn_forward(u_0, u_1, w1, w2):
    """Mirror of FFN.forward (bias=False).

    u_0, u_1: (..., in_features)
    w1: (hidden, in)  -- torch fc1.weight layout (kept; contraction on last dim)
    w2: (out, hidden) -- torch fc2.weight layout
    returns (feat_0, feat_1), each (..., out_features)
    """
    hidden, in_f = w1.shape
    out_f = w2.shape[0]

    # Zero-pad hidden / out_features to lane multiples only when required
    # (exact: gelu(0) == 0 and zero weight rows/cols contribute nothing).
    hidden_p = _round_up(hidden, 128)
    out_f_p = _round_up(out_f, 128)
    if hidden_p != hidden:
        w1 = jnp.pad(w1, ((0, hidden_p - hidden), (0, 0)))
        w2 = jnp.pad(w2, ((0, 0), (0, hidden_p - hidden)))
    if out_f_p != out_f:
        w2 = jnp.pad(w2, ((0, out_f_p - out_f), (0, 0)))

    outs = []
    for u in (u_0, u_1):           # one pallas_call per stream (no concat copy)
        lead = u.shape[:-1]
        y = _ffn_2d(u.reshape(-1, in_f), w1, w2)
        if out_f_p != out_f:
            y = y[:, :out_f]
        outs.append(y.reshape(*lead, out_f))
    return tuple(outs)


# --------------------------------------------------------------------------- #
# Reference + self-test
# --------------------------------------------------------------------------- #
def _ref_ffn(u, w1, w2):
    h = jnp.dot(u, w1.T, precision=jax.lax.Precision.HIGHEST)
    h = _gelu_exact(h)
    return jnp.dot(h, w2.T, precision=jax.lax.Precision.HIGHEST)


def _run_case(key, batch, seq0, seq1, in_f, hidden, out_f, dtype, atol, rtol):
    k0, k1, kw1, kw2 = jax.random.split(key, 4)
    u_0 = jax.random.normal(k0, (batch, seq0, in_f), dtype=jnp.float32).astype(dtype)
    u_1 = jax.random.normal(k1, (batch, seq1, in_f), dtype=jnp.float32).astype(dtype)
    b1 = in_f ** -0.5
    b2 = hidden ** -0.5
    w1 = jax.random.uniform(kw1, (hidden, in_f), minval=-b1, maxval=b1,
                            dtype=jnp.float32).astype(dtype)
    w2 = jax.random.uniform(kw2, (out_f, hidden), minval=-b2, maxval=b2,
                            dtype=jnp.float32).astype(dtype)

    f0, f1 = ffn_forward(u_0, u_1, w1, w2)
    jax.block_until_ready((f0, f1))
    assert f0.shape == (batch, seq0, out_f)
    assert f1.shape == (batch, seq1, out_f)

    r0 = _ref_ffn(u_0.astype(jnp.float32), w1.astype(jnp.float32), w2.astype(jnp.float32))
    r1 = _ref_ffn(u_1.astype(jnp.float32), w1.astype(jnp.float32), w2.astype(jnp.float32))
    e0 = float(jnp.max(jnp.abs(f0.astype(jnp.float32) - r0)))
    e1 = float(jnp.max(jnp.abs(f1.astype(jnp.float32) - r1)))
    assert jnp.allclose(f0.astype(jnp.float32), r0, atol=atol, rtol=rtol), e0
    assert jnp.allclose(f1.astype(jnp.float32), r1, atol=atol, rtol=rtol), e1


if __name__ == "__main__":
    key = jax.random.PRNGKey(0)
    keys = jax.random.split(key, 3)

    # 1) Lane-aligned shapes, f32.
    _run_case(keys[0], batch=2, seq0=128, seq1=128, in_f=128, hidden=256,
              out_f=128, dtype=jnp.float32, atol=2e-4, rtol=2e-4)

    # 2) Odd shapes: exercises the masked boundary row tile (no wrapper pad)
    #    and the hidden / out_features 128-padding path.
    _run_case(keys[1], batch=2, seq0=75, seq1=53, in_f=192, hidden=320,
              out_f=192, dtype=jnp.float32, atol=2e-4, rtol=2e-4)

    # 3) bf16 activations/weights, f32 accumulation (bf16 MXU path; loose tol).
    _run_case(keys[2], batch=2, seq0=64, seq1=64, in_f=128, hidden=256,
              out_f=128, dtype=jnp.bfloat16, atol=1e-1, rtol=1e-1)

    print("KERNEL_OK")
</pallas_src>

<mosaic_0001>
module attributes {stable_mosaic.version = 11 : i64} {
  func.func @_ffn_kernel_full_n(%arg0: i32, %arg1: i32, %arg2: memref<128x128xf32, #tpu.memory_space<vmem>>, %arg3: memref<256x128xf32, #tpu.memory_space<vmem>>, %arg4: memref<128x256xf32, #tpu.memory_space<vmem>>, %arg5: memref<128x128xf32, #tpu.memory_space<vmem>>, %arg6: memref<128x128xf32, #tpu.memory_space<vmem>>) attributes {dimension_semantics = [#tpu.dimension_semantics<parallel>, #tpu.dimension_semantics<arbitrary>], iteration_bounds = array<i64: 2, 1>, scalar_prefetch = 0 : i64, scratch_operands = 1 : i64, tpu.core_type = #tpu.core_type<tc>, window_params = [{transform_indices = @transform_0, window_bounds = array<i64: 128, 128>}, {transform_indices = @transform_1, window_bounds = array<i64: 256, 128>}, {transform_indices = @transform_2, window_bounds = array<i64: 128, 256>}, {transform_indices = @transform_3, window_bounds = array<i64: 128, 128>}]} {
    %c0_i32 = arith.constant 0 : i32
    %0 = arith.cmpi eq, %arg1, %c0_i32 : i32
    %1 = arith.extui %0 : i1 to i32
    %c0_i32_0 = arith.constant 0 : i32
    %2 = arith.cmpi ne, %1, %c0_i32_0 : i32
    scf.if %2 {
      %cst_16 = arith.constant 0.000000e+00 : f32
      %22 = vector.broadcast %cst_16 : f32 to vector<128x128xf32>
      %c0_17 = arith.constant 0 : index
      %c0_18 = arith.constant 0 : index
      %23 = vector.load %arg6[%c0_17, %c0_18] : memref<128x128xf32, #tpu.memory_space<vmem>>, vector<128x128xf32>
      tpu.vector_store %arg6[%c0_17, %c0_18], %22 {strides = array<i32>} : memref<128x128xf32, #tpu.memory_space<vmem>>, vector<128x128xf32>,
    } else {
    }
    %c0 = arith.constant 0 : index
    %c0_1 = arith.constant 0 : index
    %3 = vector.load %arg2[%c0, %c0_1] : memref<128x128xf32, #tpu.memory_space<vmem>>, vector<128x128xf32>
    %c0_2 = arith.constant 0 : index
    %c0_3 = arith.constant 0 : index
    %4 = vector.load %arg3[%c0_2, %c0_3] : memref<256x128xf32, #tpu.memory_space<vmem>>, vector<256x128xf32>
    %cst = arith.constant dense<0.000000e+00> : vector<128x256xf32>
    %5 = tpu.matmul %3, %4, %cst {dimension_numbers = #tpu.dot_dimension_numbers<[1], [1], [0], [0], [0, 0, 1, 0], [], []>} : vector<128x128xf32>, vector<256x128xf32>, vector<128x256xf32> -> vector<128x256xf32>
    %cst_4 = arith.constant 5.000000e-01 : f32
    %6 = vector.broadcast %cst_4 : f32 to vector<128x256xf32>
    %7 = arith.mulf %6, %5 : vector<128x256xf32>
    %cst_5 = arith.constant 0.707106769 : f32
    %8 = vector.broadcast %cst_5 : f32 to vector<128x256xf32>
    %9 = arith.mulf %5, %8 : vector<128x256xf32>
    %10 = math.erf %9 : vector<128x256xf32>
    %cst_6 = arith.constant 1.000000e+00 : f32
    %11 = vector.broadcast %cst_6 : f32 to vector<128x256xf32>
    %12 = arith.addf %11, %10 : vector<128x256xf32>
    %13 = arith.mulf %7, %12 : vector<128x256xf32>
    %c0_7 = arith.constant 0 : index
    %c0_8 = arith.constant 0 : index
    %14 = vector.load %arg6[%c0_7, %c0_8] : memref<128x128xf32, #tpu.memory_space<vmem>>, vector<128x128xf32>
    %c0_9 = arith.constant 0 : index
    %c0_10 = arith.constant 0 : index
    %15 = vector.load %arg4[%c0_9, %c0_10] : memref<128x256xf32, #tpu.memory_space<vmem>>, vector<128x256xf32>
    %cst_11 = arith.constant dense<0.000000e+00> : vector<128x128xf32>
    %16 = tpu.matmul %13, %15, %cst_11 {dimension_numbers = #tpu.dot_dimension_numbers<[1], [1], [0], [0], [0, 0, 1, 0], [], []>} : vector<128x256xf32>, vector<128x256xf32>, vector<128x128xf32> -> vector<128x128xf32>
    %17 = arith.addf %14, %16 : vector<128x128xf32>
    %c0_12 = arith.constant 0 : index
    %c0_13 = arith.constant 0 : index
    %18 = vector.load %arg6[%c0_12, %c0_13] : memref<128x128xf32, #tpu.memory_space<vmem>>, vector<128x128xf32>
    tpu.vector_store %arg6[%c0_12, %c0_13], %17 {strides = array<i32>} : memref<128x128xf32, #tpu.memory_space<vmem>>, vector<128x128xf32>,
    %c0_i32_14 = arith.constant 0 : i32
    %19 = arith.cmpi eq, %arg1, %c0_i32_14 : i32
    %20 = arith.extui %19 : i1 to i32
    %c0_i32_15 = arith.constant 0 : i32
    %21 = arith.cmpi ne, %20, %c0_i32_15 : i32
    scf.if %21 {
      %c0_16 = arith.constant 0 : index
      %c0_17 = arith.constant 0 : index
      %22 = vector.load %arg6[%c0_16, %c0_17] : memref<128x128xf32, #tpu.memory_space<vmem>>, vector<128x128xf32>
      %c0_18 = arith.constant 0 : index
      %c0_19 = arith.constant 0 : index
      %23 = vector.load %arg5[%c0_18, %c0_19] : memref<128x128xf32, #tpu.memory_space<vmem>>, vector<128x128xf32>
      tpu.vector_store %arg5[%c0_18, %c0_19], %22 {strides = array<i32>} : memref<128x128xf32, #tpu.memory_space<vmem>>, vector<128x128xf32>,
    } else {
    }
    return
  }
  func.func @transform_0(%arg0: i32, %arg1: i32) -> (i32, i32) {
    %c0_i32 = arith.constant 0 : i32
    %c0_i32_0 = arith.constant 0 : i32
    return %arg0, %c0_i32 : i32, i32
  }
  func.func @transform_1(%arg0: i32, %arg1: i32) -> (i32, i32) {
    %c0_i32 = arith.constant 0 : i32
    %c0_i32_0 = arith.constant 0 : i32
    return %arg1, %c0_i32 : i32, i32
  }
  func.func @transform_2(%arg0: i32, %arg1: i32) -> (i32, i32) {
    %c0_i32 = arith.constant 0 : i32
    %c0_i32_0 = arith.constant 0 : i32
    return %c0_i32, %arg1 : i32, i32
  }
  func.func @transform_3(%arg0: i32, %arg1: i32) -> (i32, i32) {
    %c0_i32 = arith.constant 0 : i32
    %c0_i32_0 = arith.constant 0 : i32
    return %arg0, %c0_i32 : i32, i32
  }
}

module attributes {stable_mosaic.version = 11 : i64} {
  func.func @_ffn_kernel_full_n(%arg0: i32, %arg1: i32, %arg2: memref<128x128xf32, #tpu.memory_space<vmem>>, %arg3: memref<256x128xf32, #tpu.memory_space<vmem>>, %arg4: memref<128x256xf32, #tpu.memory_space<vmem>>, %arg5: memref<128x128xf32, #tpu.memory_space<vmem>>, %arg6: memref<128x128xf32, #tpu.memory_space<vmem>>) attributes {dimension_semantics = [#tpu.dimension_semantics<parallel>, #tpu.dimension_semantics<arbitrary>], iteration_bounds = array<i64: 2, 1>, scalar_prefetch = 0 : i64, scratch_operands = 1 : i64, tpu.core_type = #tpu.core_type<tc>, window_params = [{transform_indices = @transform_0, window_bounds = array<i64: 128, 128>}, {transform_indices = @transform_1, window_bounds = array<i64: 256, 128>}, {transform_indices = @transform_2, window_bounds = array<i64: 128, 256>}, {transform_indices = @transform_3, window_bounds = array<i64: 128, 128>}]} {
    %c0_i32 = arith.constant 0 : i32
    %0 = arith.cmpi eq, %arg1, %c0_i32 : i32
    %1 = arith.extui %0 : i1 to i32
    %c0_i32_0 = arith.constant 0 : i32
    %2 = arith.cmpi ne, %1, %c0_i32_0 : i32
    scf.if %2 {
      %cst_16 = arith.constant 0.000000e+00 : f32
      %22 = vector.broadcast %cst_16 : f32 to vector<128x128xf32>
      %c0_17 = arith.constant 0 : index
      %c0_18 = arith.constant 0 : index
      %23 = vector.load %arg6[%c0_17, %c0_18] : memref<128x128xf32, #tpu.memory_space<vmem>>, vector<128x128xf32>
      tpu.vector_store %arg6[%c0_17, %c0_18], %22 {strides = array<i32>} : memref<128x128xf32, #tpu.memory_space<vmem>>, vector<128x128xf32>,
    } else {
    }
    %c0 = arith.constant 0 : index
    %c0_1 = arith.constant 0 : index
    %3 = vector.load %arg2[%c0, %c0_1] : memref<128x128xf32, #tpu.memory_space<vmem>>, vector<128x128xf32>
    %c0_2 = arith.constant 0 : index
    %c0_3 = arith.constant 0 : index
    %4 = vector.load %arg3[%c0_2, %c0_3] : memref<256x128xf32, #tpu.memory_space<vmem>>, vector<256x128xf32>
    %cst = arith.constant dense<0.000000e+00> : vector<128x256xf32>
    %5 = tpu.matmul %3, %4, %cst {dimension_numbers = #tpu.dot_dimension_numbers<[1], [1], [0], [0], [0, 0, 1, 0], [], []>} : vector<128x128xf32>, vector<256x128xf32>, vector<128x256xf32> -> vector<128x256xf32>
    %cst_4 = arith.constant 5.000000e-01 : f32
    %6 = vector.broadcast %cst_4 : f32 to vector<128x256xf32>
    %7 = arith.mulf %6, %5 : vector<128x256xf32>
    %cst_5 = arith.constant 0.707106769 : f32
    %8 = vector.broadcast %cst_5 : f32 to vector<128x256xf32>
    %9 = arith.mulf %5, %8 : vector<128x256xf32>
    %10 = math.erf %9 : vector<128x256xf32>
    %cst_6 = arith.constant 1.000000e+00 : f32
    %11 = vector.broadcast %cst_6 : f32 to vector<128x256xf32>
    %12 = arith.addf %11, %10 : vector<128x256xf32>
    %13 = arith.mulf %7, %12 : vector<128x256xf32>
    %c0_7 = arith.constant 0 : index
    %c0_8 = arith.constant 0 : index
    %14 = vector.load %arg6[%c0_7, %c0_8] : memref<128x128xf32, #tpu.memory_space<vmem>>, vector<128x128xf32>
    %c0_9 = arith.constant 0 : index
    %c0_10 = arith.constant 0 : index
    %15 = vector.load %arg4[%c0_9, %c0_10] : memref<128x256xf32, #tpu.memory_space<vmem>>, vector<128x256xf32>
    %cst_11 = arith.constant dense<0.000000e+00> : vector<128x128xf32>
    %16 = tpu.matmul %13, %15, %cst_11 {dimension_numbers = #tpu.dot_dimension_numbers<[1], [1], [0], [0], [0, 0, 1, 0], [], []>} : vector<128x256xf32>, vector<128x256xf32>, vector<128x128xf32> -> vector<128x128xf32>
    %17 = arith.addf %14, %16 : vector<128x128xf32>
    %c0_12 = arith.constant 0 : index
    %c0_13 = arith.constant 0 : index
    %18 = vector.load %arg6[%c0_12, %c0_13] : memref<128x128xf32, #tpu.memory_space<vmem>>, vector<128x128xf32>
    tpu.vector_store %arg6[%c0_12, %c0_13], %17 {strides = array<i32>} : memref<128x128xf32, #tpu.memory_space<vmem>>, vector<128x128xf32>,
    %c0_i32_14 = arith.constant 0 : i32
    %19 = arith.cmpi eq, %arg1, %c0_i32_14 : i32
    %20 = arith.extui %19 : i1 to i32
    %c0_i32_15 = arith.constant 0 : i32
    %21 = arith.cmpi ne, %20, %c0_i32_15 : i32
    scf.if %21 {
      %c0_16 = arith.constant 0 : index
      %c0_17 = arith.constant 0 : index
      %22 = vector.load %arg6[%c0_16, %c0_17] : memref<128x128xf32, #tpu.memory_space<vmem>>, vector<128x128xf32>
      %c0_18 = arith.constant 0 : index
      %c0_19 = arith.constant 0 : index
      %23 = vector.load %arg5[%c0_18, %c0_19] : memref<128x128xf32, #tpu.memory_space<vmem>>, vector<128x128xf32>
      tpu.vector_store %arg5[%c0_18, %c0_19], %22 {strides = array<i32>} : memref<128x128xf32, #tpu.memory_space<vmem>>, vector<128x128xf32>,
    } else {
    }
    return
  }
  func.func @transform_0(%arg0: i32, %arg1: i32) -> (i32, i32) {
    %c0_i32 = arith.constant 0 : i32
    %c0_i32_0 = arith.constant 0 : i32
    return %arg0, %c0_i32 : i32, i32
  }
  func.func @transform_1(%arg0: i32, %arg1: i32) -> (i32, i32) {
    %c0_i32 = arith.constant 0 : i32
    %c0_i32_0 = arith.constant 0 : i32
    return %arg1, %c0_i32 : i32, i32
  }
  func.func @transform_2(%arg0: i32, %arg1: i32) -> (i32, i32) {
    %c0_i32 = arith.constant 0 : i32
    %c0_i32_0 = arith.constant 0 : i32
    return %c0_i32, %arg1 : i32, i32
  }
  func.func @transform_3(%arg0: i32, %arg1: i32) -> (i32, i32) {
    %c0_i32 = arith.constant 0 : i32
    %c0_i32_0 = arith.constant 0 : i32
    return %arg0, %c0_i32 : i32, i32
  }
}

</mosaic_0001>

<llo_original>
// kernel: ffn_forward.2
$region0: #{ffn_forward.2}
  #allocation0 [shape = 'u32[]', space=smem, size = 0x4, offset = 0x4, fixed_abs, tag = 'smem constant byte address 0x4 - core index']
  #allocation1 [shape = 'u32[144,128]{1,0:T(1,128)}', space=vmem, size = 0x12000, scoped, tag = 'internal scratch']
  #allocation2 [shape = 'f32[128,128]{1,0:T(8,128)}', space=vmem, size = 0x10000, scoped, tag = 'scratch operand']
  %s0 = inlined_call_operand.hbm [shape: f32[256,128], index: 0, kind: input, shape index: {}]
  %s1 = inlined_call_operand.hbm [shape: f32[256,128], index: 1, kind: input, shape index: {}]
  %s2 = inlined_call_operand.hbm [shape: f32[128,256], index: 2, kind: input, shape index: {}]
  %s3 = inlined_call_operand.hbm [shape: f32[256,128], index: 3, kind: output, shape index: {}]
  %s4 = sld [smem:[#allocation0]]
  $region65: #{ffn_forward.2} parent=0
    _
  %s6 = ssub.s32 1, %s4
  %s7 = scalar_select 0, %s6, %s4
  $region1: #{ffn_forward.2} parent=0
    #allocation3 [shape = 'u8[131072]{0}', space=vmem, size = 0x20000, scoped, tag = 'input window, operand 0']
    #allocation4 [shape = 's32[2]{0}', space=sflag, size = 0x8, scoped, tag = 'scoped memory for ffn_forward.2']
    #allocation5 [shape = 's32[2]{0}', space=sflag, size = 0x8, scoped, tag = 'scoped memory for ffn_forward.2']
    #allocation6 [shape = 'u8[131072]{0}', space=vmem, size = 0x20000, scoped, tag = 'input window, operand 1, single buffered']
    #allocation7 [shape = 's32[1]{0}', space=sflag, size = 0x4, scoped, tag = 'scoped memory for ffn_forward.2']
    #allocation8 [shape = 'u8[131072]{0}', space=vmem, size = 0x20000, scoped, tag = 'input window, operand 2, single buffered']
    #allocation9 [shape = 'u8[131072]{0}', space=vmem, size = 0x20000, scoped, tag = 'output window, operand 0']
    %8 = vsyncpa [#allocation4], 0
    %s9 = scalar_lea.sflag [#allocation4], 1
    %10 = vsyncpa %s9, 0
    %11 = vsyncpa [#allocation7], 0
    %12 = vsyncpa [#allocation5], 0
    %s13 = scalar_lea.sflag [#allocation5], 1
    %14 = vsyncpa %s13, 0
    loop: start=0, step=1, limit=4
    $region2: #{ffn_forward.2} parent=1 // loop_pre_header
      _
    $region3: #{ffn_forward.2} parent=1 // loop_header
      %s16 = sphi 0, %s20
      %p17 = scmp.ge.s32.totalorder %s16, 4
      %s23 = sphi 0, %s35
      %s24 = sphi 0, %s31
      %s25 = sphi 0, %s23
      %s26 = sphi 0, %s24
      %s27 = sphi 0, %s25
      %s28 = sphi 0, %s26
      %s38 = sphi 0, %s40
      %s41 = sphi 0, %s38
      %s42 = sphi 0, %s41
      %s58 = sphi 0, %s42
      %s64 = sphi 0, %s66
      %s67 = sphi 0, %s64
      %s68 = sphi 0, %s67
      %s84 = sphi 0, %s68
      %s90 = sphi 0, %s92
      %s93 = sphi 0, %s90
      %s94 = sphi 0, %s93
      %s110 = sphi 0, %s94
      %s116 = sphi 0, %s118
      %s119 = sphi 0, %s116
      %s120 = sphi 0, %s119
      %s136 = sphi 0, %s120
    $region4: #{ffn_forward.2} parent=1 // loop_header_branch
      %19 = sbr.rel (%p17) target = $region8
    $region5: #{ffn_forward.2} parent=1 // loop_body
      %s21 = ssub.s32 %s16, 1
      %s22 = ssub.s32 %s16, 2
      %s29 = sadd.s32 1, %s24
      %p30 = scmp.ge.s32.totalorder %s29, 1
      %s31 = scalar_select %p30, 0, %s29
      %s32 = sadd.s32 1, %s23
      %s33 = scalar_select %p30, %s32, %s23
      %p34 = scmp.ge.s32.totalorder %s33, 2
      %s35 = scalar_select %p34, 0, %s33
      %s36 = ssub.s32 %s23, %s35
      %p37 = scmp.eq.s32.totalorder %s36, 0
      %s39 = sadd.s32 %s38, 1
      %s40 = scalar_select %p37, %s38, %s39
      %p43 = pneg %p37
      %p44 = scmp.eq.s32.totalorder %s16, 1
      %p45 = por %p43, %p44
      %p46 = scmp.ne.s32.totalorder %s38, %s41
      %p47 = scmp.eq.s32.totalorder %s16, 0
      %p48 = por %p46, %p47
      %p49 = scmp.ne.s32.totalorder %s38, %s41
      %p50 = scmp.eq.s32.totalorder %s21, 1
      %p51 = por %p49, %p50
      %p52 = scmp.ne.s32.totalorder %s41, %s42
      %p53 = scmp.eq.s32.totalorder %s21, 0
      %p54 = por %p52, %p53
      %p55 = scmp.ne.s32.totalorder %s41, %s42
      %p56 = scmp.eq.s32.totalorder %s22, 1
      %p57 = por %p55, %p56
      %p59 = scmp.ne.s32.totalorder %s42, %s58
      %p60 = scmp.eq.s32.totalorder %s22, 0
      %p61 = por %p59, %p60
      %s62 = ssub.s32 %s24, %s31
      %p63 = scmp.eq.s32.totalorder %s62, 0
      %s65 = sadd.s32 %s64, 1
      %s66 = scalar_select %p63, %s64, %s65
      %p69 = pneg %p63
      %p70 = scmp.eq.s32.totalorder %s16, 1
      %p71 = por %p69, %p70
      %p72 = scmp.ne.s32.totalorder %s64, %s67
      %p73 = scmp.eq.s32.totalorder %s16, 0
      %p74 = por %p72, %p73
      %p75 = scmp.ne.s32.totalorder %s64, %s67
      %p76 = scmp.eq.s32.totalorder %s21, 1
      %p77 = por %p75, %p76
      %p78 = scmp.ne.s32.totalorder %s67, %s68
      %p79 = scmp.eq.s32.totalorder %s21, 0
      %p80 = por %p78, %p79
      %p81 = scmp.ne.s32.totalorder %s67, %s68
      %p82 = scmp.eq.s32.totalorder %s22, 1
      %p83 = por %p81, %p82
      %p85 = scmp.ne.s32.totalorder %s68, %s84
      %p86 = scmp.eq.s32.totalorder %s22, 0
      %p87 = por %p85, %p86
      %s88 = ssub.s32 %s24, %s31
      %p89 = scmp.eq.s32.totalorder %s88, 0
      %s91 = sadd.s32 %s90, 1
      %s92 = scalar_select %p89, %s90, %s91
      %p95 = pneg %p89
      %p96 = scmp.eq.s32.totalorder %s16, 1
      %p97 = por %p95, %p96
      %p98 = scmp.ne.s32.totalorder %s90, %s93
      %p99 = scmp.eq.s32.totalorder %s16, 0
      %p100 = por %p98, %p99
      %p101 = scmp.ne.s32.totalorder %s90, %s93
      %p102 = scmp.eq.s32.totalorder %s21, 1
      %p103 = por %p101, %p102
      %p104 = scmp.ne.s32.totalorder %s93, %s94
      %p105 = scmp.eq.s32.totalorder %s21, 0
      %p106 = por %p104, %p105
      %p107 = scmp.ne.s32.totalorder %s93, %s94
      %p108 = scmp.eq.s32.totalorder %s22, 1
      %p109 = por %p107, %p108
      %p111 = scmp.ne.s32.totalorder %s94, %s110
      %p112 = scmp.eq.s32.totalorder %s22, 0
      %p113 = por %p111, %p112
      %s114 = ssub.s32 %s23, %s35
      %p115 = scmp.eq.s32.totalorder %s114, 0
      %s117 = sadd.s32 %s116, 1
      %s118 = scalar_select %p115, %s116, %s117
      %p121 = pneg %p115
      %p122 = scmp.eq.s32.totalorder %s16, 1
      %p123 = por %p121, %p122
      %p124 = scmp.ne.s32.totalorder %s116, %s119
      %p125 = scmp.eq.s32.totalorder %s16, 0
      %p126 = por %p124, %p125
      %p127 = scmp.ne.s32.totalorder %s116, %s119
      %p128 = scmp.eq.s32.totalorder %s21, 1
      %p129 = por %p127, %p128
      %p130 = scmp.ne.s32.totalorder %s119, %s120
      %p131 = scmp.eq.s32.totalorder %s21, 0
      %p132 = por %p130, %p131
      %p133 = scmp.ne.s32.totalorder %s119, %s120
      %p134 = scmp.eq.s32.totalorder %s22, 1
      %p135 = por %p133, %p134
      %p137 = scmp.ne.s32.totalorder %s120, %s136
      %p138 = scmp.eq.s32.totalorder %s22, 0
      %p139 = por %p137, %p138
      %p140 = scmp.le.s32.totalorder 1, %s16
      %p141 = scmp.lt.s32.totalorder %s16, 3
      %p142 = pnand %p140, %p141
      %p143 = pneg %p142
      // Predicated region
      $region9: #{ffn_forward.2} parent=5 // pred_check
        _
      $region10: #{ffn_forward.2} parent=5 // pred_check_branch
        %145 = sbr.rel (%p142) target = $region12
      $region11: #{ffn_forward.2} parent=5 // pred_region
        %s146 = ssub.s32 %s16, 1
        // Predicated region
        $region13: #{ffn_forward.2} parent=11 // pred_check
          %p147 = pneg %p80
        $region14: #{ffn_forward.2} parent=11 // pred_check_branch
          %149 = sbr.rel (%p147) target = $region16
        $region15: #{ffn_forward.2} parent=11 // pred_region
          %s150 = smul.u32 32, %s26
          %s152 = ssub.s32 4096, 4096
          %153 = vsyncadd [#allocation7], %s152
          %s154 = smul.addr %s150, 128
          %s155 = scalar_lea.hbm %s1, %s154
          %s156 = sshll.u32 [#allocation6], 4
          %s157 = int_to_ptr.vmem [resolvable:$true] %s156
          %162 = dma.hbm_to_vmem [thread:$0]  %s155, 4096, %s157, [#allocation7], 128, 128, 8
        $region16: #{ffn_forward.2} parent=11 // pred_fallthru
          _
        // Predicated region
        $region17: #{ffn_forward.2} parent=11 // pred_check
          %p163 = pneg %p106
        $region18: #{ffn_forward.2} parent=11 // pred_check_branch
          %165 = sbr.rel (%p163) target = $region20
        $region19: #{ffn_forward.2} parent=11 // pred_region
          %s166 = smul.u32 2, %s26
          %s168 = ssub.s32 4096, 4096
          %169 = vsyncadd [#allocation7], %s168
          %s170 = smul.addr %s166, 128
          %s171 = scalar_lea.hbm %s2, %s170
          %s172 = sshll.u32 [#allocation8], 4
          %s173 = int_to_ptr.vmem [resolvable:$true] %s172
          %178 = dma.hbm_to_vmem [thread:$0]  %s171, 4096, %s173, [#allocation7], 256, 256, 16
        $region20: #{ffn_forward.2} parent=11 // pred_fallthru
          _
      $region12: #{ffn_forward.2} parent=5 // pred_fallthru
        _
      %p179 = scmp.lt.s32.totalorder %s16, 2
      // Predicated region
      $region21: #{ffn_forward.2} parent=5 // pred_check
        %p180 = pneg %p179
      $region22: #{ffn_forward.2} parent=5 // pred_check_branch
        %182 = sbr.rel (%p180) target = $region24
      $region23: #{ffn_forward.2} parent=5 // pred_region
        // Predicated region
        $region25: #{ffn_forward.2} parent=23 // pred_check
          %p183 = pneg %p48
        $region26: #{ffn_forward.2} parent=23 // pred_check_branch
          %185 = sbr.rel (%p183) target = $region28
        $region27: #{ffn_forward.2} parent=23 // pred_region
          %s186 = sand.u32 %s38, 1
          %s187 = scalar_lea.sflag [#allocation4], %s186
          %s188 = sand.u32 %s38, 1
          %s189 = smul.addr %s188, 128
          %s190 = scalar_lea.vmem [#allocation3], %s189
          %s191 = smul.u32 16, %s23
          %s193 = ssub.s32 2048, 2048
          %194 = vsyncadd %s187, %s193
          %s195 = smul.addr %s191, 128
          %s196 = scalar_lea.hbm %s0, %s195
          %s197 = sshll.u32 %s190, 4
          %s198 = int_to_ptr.vmem [resolvable:$true] %s197
          %203 = dma.hbm_to_vmem [thread:$0]  %s196, 2048, %s198, %s187, 128, 128, 8
        $region28: #{ffn_forward.2} parent=23 // pred_fallthru
          _
      $region24: #{ffn_forward.2} parent=5 // pred_fallthru
        _
      %p204 = scmp.le.s32.totalorder 1, %s16
      %p205 = scmp.lt.s32.totalorder %s16, 3
      %p206 = pnand %p204, %p205
      %p207 = pneg %p206
      // Predicated region
      $region29: #{ffn_forward.2} parent=5 // pred_check
        _
      $region30: #{ffn_forward.2} parent=5 // pred_check_branch
        %209 = sbr.rel (%p206) target = $region32
      $region31: #{ffn_forward.2} parent=5 // pred_region
        %s210 = ssub.s32 %s16, 1
        %s211 = sand.u32 %s41, 1
        %s212 = scalar_lea.sflag [#allocation4], %s211
        %s213 = sand.u32 %s41, 1
        %s214 = smul.addr %s213, 128
        %s215 = scalar_lea.vmem [#allocation3], %s214
        // Predicated region
        $region33: #{ffn_forward.2} parent=31 // pred_check
          %p216 = pneg %p54
        $region34: #{ffn_forward.2} parent=31 // pred_check_branch
          %218 = sbr.rel (%p216) target = $region36
        $region35: #{ffn_forward.2} parent=31 // pred_region
          %219 = dma.done %s212, 2048
        $region36: #{ffn_forward.2} parent=31 // pred_fallthru
          _
        // Predicated region
        $region37: #{ffn_forward.2} parent=31 // pred_check
          %p220 = pneg %p80
        $region38: #{ffn_forward.2} parent=31 // pred_check_branch
          %222 = sbr.rel (%p220) target = $region40
        $region39: #{ffn_forward.2} parent=31 // pred_region
          %223 = dma.done [#allocation7], 4096
        $region40: #{ffn_forward.2} parent=31 // pred_fallthru
          _
        // Predicated region
        $region41: #{ffn_forward.2} parent=31 // pred_check
          %p224 = pneg %p106
        $region42: #{ffn_forward.2} parent=31 // pred_check_branch
          %226 = sbr.rel (%p224) target = $region44
        $region43: #{ffn_forward.2} parent=31 // pred_region
          %227 = dma.done [#allocation7], 4096
        $region44: #{ffn_forward.2} parent=31 // pred_fallthru
          _
        %s228 = sand.u32 %s41, 1
        %s229 = scalar_lea.sflag [#allocation4], %s228
        %s230 = sand.u32 %s41, 1
        %s231 = smul.addr %s230, 128
        %s232 = scalar_lea.vmem [#allocation3], %s231
        %p233 = pneg %p54
        %p234 = pneg %p51
        %p235 = pneg %p80
        %p236 = pneg %p77
        %p237 = pneg %p106
        %p238 = pneg %p103
        %p239 = pneg %p132
        %p240 = pneg %p129
        %s241 = sand.u32 %s119, 1
        %s242 = scalar_lea.sflag [#allocation5], %s241
        %s243 = sand.u32 %s119, 1
        %s244 = smul.addr %s243, 128
        %s245 = scalar_lea.vmem [#allocation9], %s244
        %s246 = smul.u32 16, %s25
        %s247 = smul.u32 32, %s26
        %s248 = smul.u32 2, %s26
        %s249 = smul.u32 16, %s25
        %p250 = scmp.eq.s32.totalorder %s26, 0
        // Predicated region
        $region45: #{ffn_forward.2} parent=31 // pred_check
          %p251 = pneg %p250
        $region46: #{ffn_forward.2} parent=31 // pred_check_branch
          %253 = sbr.rel (%p251) target = $region48
        $region47: #{ffn_forward.2} parent=31 // pred_region
          %254 = vst [vmem:[#allocation2] sm:$0xff] 0.0
          %255 = vst [vmem:[#allocation2 + $0x8] sm:$0xff] 0.0
          %256 = vst [vmem:[#allocation2 + $0x10] sm:$0xff] 0.0
          %257 = vst [vmem:[#allocation2 + $0x18] sm:$0xff] 0.0
          %258 = vst [vmem:[#allocation2 + $0x20] sm:$0xff] 0.0
          %259 = vst [vmem:[#allocation2 + $0x28] sm:$0xff] 0.0
          %260 = vst [vmem:[#allocation2 + $0x30] sm:$0xff] 0.0
          %261 = vst [vmem:[#allocation2 + $0x38] sm:$0xff] 0.0
          %262 = vst [vmem:[#allocation2 + $0x40] sm:$0xff] 0.0
          %263 = vst [vmem:[#allocation2 + $0x48] sm:$0xff] 0.0
          %264 = vst [vmem:[#allocation2 + $0x50] sm:$0xff] 0.0
          %265 = vst [vmem:[#allocation2 + $0x58] sm:$0xff] 0.0
          %266 = vst [vmem:[#allocation2 + $0x60] sm:$0xff] 0.0
          %267 = vst [vmem:[#allocation2 + $0x68] sm:$0xff] 0.0
          %268 = vst [vmem:[#allocation2 + $0x70] sm:$0xff] 0.0
          %269 = vst [vmem:[#allocation2 + $0x78] sm:$0xff] 0.0
        $region48: #{ffn_forward.2} parent=31 // pred_fallthru
          _
        %v270 = vld [vmem:[%s215] sm:$0xff]
        %v271 = vld [vmem:[%s215 + $0x8] sm:$0xff]
        %v272 = vld [vmem:[%s215 + $0x10] sm:$0xff]
        %v273 = vld [vmem:[%s215 + $0x18] sm:$0xff]
        %v274 = vld [vmem:[%s215 + $0x20] sm:$0xff]
        %v275 = vld [vmem:[%s215 + $0x28] sm:$0xff]
        %v276 = vld [vmem:[%s215 + $0x30] sm:$0xff]
        %v277 = vld [vmem:[%s215 + $0x38] sm:$0xff]
        %v278 = vld [vmem:[%s215 + $0x40] sm:$0xff]
        %v279 = vld [vmem:[%s215 + $0x48] sm:$0xff]
        %v280 = vld [vmem:[%s215 + $0x50] sm:$0xff]
        %v281 = vld [vmem:[%s215 + $0x58] sm:$0xff]
        %v282 = vld [vmem:[%s215 + $0x60] sm:$0xff]
        %v283 = vld [vmem:[%s215 + $0x68] sm:$0xff]
        %v284 = vld [vmem:[%s215 + $0x70] sm:$0xff]
        %v285 = vld [vmem:[%s215 + $0x78] sm:$0xff]
        %v286 = vld [vmem:[#allocation6] sm:$0xff]
        %v287 = vld [vmem:[#allocation6 + $0x8] sm:$0xff]
        %v288 = vld [vmem:[#allocation6 + $0x10] sm:$0xff]
        %v289 = vld [vmem:[#allocation6 + $0x18] sm:$0xff]
        %v290 = vld [vmem:[#allocation6 + $0x20] sm:$0xff]
        %v291 = vld [vmem:[#allocation6 + $0x28] sm:$0xff]
        %v292 = vld [vmem:[#allocation6 + $0x30] sm:$0xff]
        %v293 = vld [vmem:[#allocation6 + $0x38] sm:$0xff]
        %v294 = vld [vmem:[#allocation6 + $0x40] sm:$0xff]
        %v295 = vld [vmem:[#allocation6 + $0x48] sm:$0xff]
        %v296 = vld [vmem:[#allocation6 + $0x50] sm:$0xff]
        %v297 = vld [vmem:[#allocation6 + $0x58] sm:$0xff]
        %v298 = vld [vmem:[#allocation6 + $0x60] sm:$0xff]
        %v299 = vld [vmem:[#allocation6 + $0x68] sm:$0xff]
        %v300 = vld [vmem:[#allocation6 + $0x70] sm:$0xff]
        %v301 = vld [vmem:[#allocation6 + $0x78] sm:$0xff]
        %v302 = vld [vmem:[#allocation6 + $0x80] sm:$0xff]
        %v303 = vld [vmem:[#allocation6 + $0x88] sm:$0xff]
        %v304 = vld [vmem:[#allocation6 + $0x90] sm:$0xff]
        %v305 = vld [vmem:[#allocation6 + $0x98] sm:$0xff]
        %v306 = vld [vmem:[#allocation6 + $0xa0] sm:$0xff]
        %v307 = vld [vmem:[#allocation6 + $0xa8] sm:$0xff]
        %v308 = vld [vmem:[#allocation6 + $0xb0] sm:$0xff]
        %v309 = vld [vmem:[#allocation6 + $0xb8] sm:$0xff]
        %v310 = vld [vmem:[#allocation6 + $0xc0] sm:$0xff]
        %v311 = vld [vmem:[#allocation6 + $0xc8] sm:$0xff]
        %v312 = vld [vmem:[#allocation6 + $0xd0] sm:$0xff]
        %v313 = vld [vmem:[#allocation6 + $0xd8] sm:$0xff]
        %v314 = vld [vmem:[#allocation6 + $0xe0] sm:$0xff]
        %v315 = vld [vmem:[#allocation6 + $0xe8] sm:$0xff]
        %v316 = vld [vmem:[#allocation6 + $0xf0] sm:$0xff]
        %v317 = vld [vmem:[#allocation6 + $0xf8] sm:$0xff]
        %318 = vmatprep.subr.mxu0 0.0
        %319 = vmatpush1.xpose.msra.mxu0 %v286
        %320 = vmatprep.subr.mxu0 0.0
        %321 = vmatpush1.xpose.msra.mxu0 %v287
        %322 = vmatprep.subr.mxu0 0.0
        %323 = vmatpush1.xpose.msra.mxu0 %v288
        %324 = vmatprep.subr.mxu0 0.0
        %325 = vmatpush1.xpose.msra.mxu0 %v289
        %326 = vmatprep.subr.mxu0 0.0
        %327 = vmatpush1.xpose.msra.mxu0 %v290
        %328 = vmatprep.subr.mxu0 0.0
        %329 = vmatpush1.xpose.msra.mxu0 %v291
        %330 = vmatprep.subr.mxu0 0.0
        %331 = vmatpush1.xpose.msra.mxu0 %v292
        %332 = vmatprep.subr.mxu0 0.0
        %333 = vmatpush1.xpose.msra.mxu0 %v293
        %334 = vmatprep.subr.mxu0 0.0
        %335 = vmatpush1.xpose.msra.mxu0 %v294
        %336 = vmatprep.subr.mxu0 0.0
        %337 = vmatpush1.xpose.msra.mxu0 %v295
        %338 = vmatprep.subr.mxu0 0.0
        %339 = vmatpush1.xpose.msra.mxu0 %v296
        %340 = vmatprep.subr.mxu0 0.0
        %341 = vmatpush1.xpose.msra.mxu0 %v297
        %342 = vmatprep.subr.mxu0 0.0
        %343 = vmatpush1.xpose.msra.mxu0 %v298
        %344 = vmatprep.subr.mxu0 0.0
        %345 = vmatpush1.xpose.msra.mxu0 %v299
        %346 = vmatprep.subr.mxu0 0.0
        %347 = vmatpush1.xpose.msra.mxu0 %v300
        %348 = vmatprep.subr.mxu0 0.0
        %349 = vmatpush1.xpose.msra.mxu0 %v301
        %350 = vmatprep.subr.mxu0 0.0
        %351 = vmatpush1.xpose.msra.mxu0 %v302
        %352 = vmatprep.subr.mxu0 0.0
        %353 = vmatpush1.xpose.msra.mxu0 %v303
        %354 = vmatprep.subr.mxu0 0.0
        %355 = vmatpush1.xpose.msra.mxu0 %v304
        %356 = vmatprep.subr.mxu0 0.0
        %357 = vmatpush1.xpose.msra.mxu0 %v305
        %358 = vmatprep.subr.mxu0 0.0
        %359 = vmatpush1.xpose.msra.mxu0 %v306
        %360 = vmatprep.subr.mxu0 0.0
        %361 = vmatpush1.xpose.msra.mxu0 %v307
        %362 = vmatprep.subr.mxu0 0.0
        %363 = vmatpush1.xpose.msra.mxu0 %v308
        %364 = vmatprep.subr.mxu0 0.0
        %365 = vmatpush1.xpose.msra.mxu0 %v309
        %366 = vmatprep.subr.mxu0 0.0
        %367 = vmatpush1.xpose.msra.mxu0 %v310
        %368 = vmatprep.subr.mxu0 0.0
        %369 = vmatpush1.xpose.msra.mxu0 %v311
        %370 = vmatprep.subr.mxu0 0.0
        %371 = vmatpush1.xpose.msra.mxu0 %v312
        %372 = vmatprep.subr.mxu0 0.0
        %373 = vmatpush1.xpose.msra.mxu0 %v313
        %374 = vmatprep.subr.mxu0 0.0
        %375 = vmatpush1.xpose.msra.mxu0 %v314
        %376 = vmatprep.subr.mxu0 0.0
        %377 = vmatpush1.xpose.msra.mxu0 %v315
        %378 = vmatprep.subr.mxu0 0.0
        %379 = vmatpush1.xpose.msra.mxu0 %v316
        %380 = vmatprep.subr.mxu0 0.0
        %381 = vmatpush1.xpose.msra.mxu0 %v317
        %382 = vmatprep.mubr.f32.mxu0 0.0
        %383 = vmatmul.mubr.f32.gmra.mrb[0].mxu0 %v270
        %v384 = vpop.f32.mrb[0].mxu0
        %v385 = vadd.f32 0.0, %v384
        %v386 = vpop.f32.mrb[0].mxu0
        %v387 = vadd.f32 0.0, %v386
        %388 = vmatprep.mubr.f32.mxu0 0.0
        %389 = vmatmul.mubr.f32.gmra.mrb[0].mxu0 %v271
        %v390 = vpop.f32.mrb[0].mxu0
        %v391 = vadd.f32 0.0, %v390
        %v392 = vpop.f32.mrb[0].mxu0
        %v393 = vadd.f32 0.0, %v392
        %394 = vmatprep.mubr.f32.mxu0 0.0
        %395 = vmatmul.mubr.f32.gmra.mrb[0].mxu0 %v272
        %v396 = vpop.f32.mrb[0].mxu0
        %v397 = vadd.f32 0.0, %v396
        %v398 = vpop.f32.mrb[0].mxu0
        %v399 = vadd.f32 0.0, %v398
        %400 = vmatprep.mubr.f32.mxu0 0.0
        %401 = vmatmul.mubr.f32.gmra.mrb[0].mxu0 %v273
        %v402 = vpop.f32.mrb[0].mxu0
        %v403 = vadd.f32 0.0, %v402
        %v404 = vpop.f32.mrb[0].mxu0
        %v405 = vadd.f32 0.0, %v404
        %406 = vmatprep.mubr.f32.mxu0 0.0
        %407 = vmatmul.mubr.f32.gmra.mrb[0].mxu0 %v274
        %v408 = vpop.f32.mrb[0].mxu0
        %v409 = vadd.f32 0.0, %v408
        %v410 = vpop.f32.mrb[0].mxu0
        %v411 = vadd.f32 0.0, %v410
        %412 = vmatprep.mubr.f32.mxu0 0.0
        %413 = vmatmul.mubr.f32.gmra.mrb[0].mxu0 %v275
        %v414 = vpop.f32.mrb[0].mxu0
        %v415 = vadd.f32 0.0, %v414
        %v416 = vpop.f32.mrb[0].mxu0
        %v417 = vadd.f32 0.0, %v416
        %418 = vmatprep.mubr.f32.mxu0 0.0
        %419 = vmatmul.mubr.f32.gmra.mrb[0].mxu0 %v276
        %v420 = vpop.f32.mrb[0].mxu0
        %v421 = vadd.f32 0.0, %v420
        %v422 = vpop.f32.mrb[0].mxu0
        %v423 = vadd.f32 0.0, %v422
        %424 = vmatprep.mubr.f32.mxu0 0.0
        %425 = vmatmul.mubr.f32.gmra.mrb[0].mxu0 %v277
        %v426 = vpop.f32.mrb[0].mxu0
        %v427 = vadd.f32 0.0, %v426
        %v428 = vpop.f32.mrb[0].mxu0
        %v429 = vadd.f32 0.0, %v428
        %430 = vmatprep.mubr.f32.mxu0 0.0
        %431 = vmatmul.mubr.f32.gmra.mrb[0].mxu0 %v278
        %v432 = vpop.f32.mrb[0].mxu0
        %v433 = vadd.f32 0.0, %v432
        %v434 = vpop.f32.mrb[0].mxu0
        %v435 = vadd.f32 0.0, %v434
        %436 = vmatprep.mubr.f32.mxu0 0.0
        %437 = vmatmul.mubr.f32.gmra.mrb[0].mxu0 %v279
        %v438 = vpop.f32.mrb[0].mxu0
        %v439 = vadd.f32 0.0, %v438
        %v440 = vpop.f32.mrb[0].mxu0
        %v441 = vadd.f32 0.0, %v440
        %442 = vmatprep.mubr.f32.mxu0 0.0
        %443 = vmatmul.mubr.f32.gmra.mrb[0].mxu0 %v280
        %v444 = vpop.f32.mrb[0].mxu0
        %v445 = vadd.f32 0.0, %v444
        %v446 = vpop.f32.mrb[0].mxu0
        %v447 = vadd.f32 0.0, %v446
        %448 = vmatprep.mubr.f32.mxu0 0.0
        %449 = vmatmul.mubr.f32.gmra.mrb[0].mxu0 %v281
        %v450 = vpop.f32.mrb[0].mxu0
        %v451 = vadd.f32 0.0, %v450
        %v452 = vpop.f32.mrb[0].mxu0
        %v453 = vadd.f32 0.0, %v452
        %454 = vmatprep.mubr.f32.mxu0 0.0
        %455 = vmatmul.mubr.f32.gmra.mrb[0].mxu0 %v282
        %v456 = vpop.f32.mrb[0].mxu0
        %v457 = vadd.f32 0.0, %v456
        %v458 = vpop.f32.mrb[0].mxu0
        %v459 = vadd.f32 0.0, %v458
        %460 = vmatprep.mubr.f32.mxu0 0.0
        %461 = vmatmul.mubr.f32.gmra.mrb[0].mxu0 %v283
        %v462 = vpop.f32.mrb[0].mxu0
        %v463 = vadd.f32 0.0, %v462
        %v464 = vpop.f32.mrb[0].mxu0
        %v465 = vadd.f32 0.0, %v464
        %466 = vmatprep.mubr.f32.mxu0 0.0
        %467 = vmatmul.mubr.f32.gmra.mrb[0].mxu0 %v284
        %v468 = vpop.f32.mrb[0].mxu0
        %v469 = vadd.f32 0.0, %v468
        %v470 = vpop.f32.mrb[0].mxu0
        %v471 = vadd.f32 0.0, %v470
        %472 = vmatprep.mubr.f32.mxu0 0.0
        %473 = vmatmul.mubr.f32.gmra.mrb[0].mxu0 %v285
        %v474 = vpop.f32.mrb[0].mxu0
        %v475 = vadd.f32 0.0, %v474
        %v476 = vpop.f32.mrb[0].mxu0
        %v477 = vadd.f32 0.0, %v476
        %478 = vdwg.mxu0
        %v479 = vmul.f32 %v385, 0.5
        %v480 = vmul.f32 %v387, 0.5
        %v481 = vmul.f32 %v391, 0.5
        %v482 = vmul.f32 %v393, 0.5
        %v483 = vmul.f32 %v397, 0.5
        %v484 = vmul.f32 %v399, 0.5
        %v485 = vmul.f32 %v403, 0.5
        %v486 = vmul.f32 %v405, 0.5
        %v487 = vmul.f32 %v409, 0.5
        %v488 = vmul.f32 %v411, 0.5
        %v489 = vmul.f32 %v415, 0.5
        %v490 = vmul.f32 %v417, 0.5
        %v491 = vmul.f32 %v421, 0.5
        %v492 = vmul.f32 %v423, 0.5
        %v493 = vmul.f32 %v427, 0.5
        %v494 = vmul.f32 %v429, 0.5
        %v495 = vmul.f32 %v433, 0.5
        %v496 = vmul.f32 %v435, 0.5
        %v497 = vmul.f32 %v439, 0.5
        %v498 = vmul.f32 %v441, 0.5
        %v499 = vmul.f32 %v445, 0.5
        %v500 = vmul.f32 %v447, 0.5
        %v501 = vmul.f32 %v451, 0.5
        %v502 = vmul.f32 %v453, 0.5
        %v503 = vmul.f32 %v457, 0.5
        %v504 = vmul.f32 %v459, 0.5
        %v505 = vmul.f32 %v463, 0.5
        %v506 = vmul.f32 %v465, 0.5
        %v507 = vmul.f32 %v469, 0.5
        %v508 = vmul.f32 %v471, 0.5
        %v509 = vmul.f32 %v475, 0.5
        %v510 = vmul.f32 %v477, 0.5
        %v511 = vmul.f32 %v385, 0.70710677
        %v512 = vmul.f32 %v387, 0.70710677
        %v513 = vmul.f32 %v391, 0.70710677
        %v514 = vmul.f32 %v393, 0.70710677
        %v515 = vmul.f32 %v397, 0.70710677
        %v516 = vmul.f32 %v399, 0.70710677
        %v517 = vmul.f32 %v403, 0.70710677
        %v518 = vmul.f32 %v405, 0.70710677
        %v519 = vmul.f32 %v409, 0.70710677
        %v520 = vmul.f32 %v411, 0.70710677
        %v521 = vmul.f32 %v415, 0.70710677
        %v522 = vmul.f32 %v417, 0.70710677
        %v523 = vmul.f32 %v421, 0.70710677
        %v524 = vmul.f32 %v423, 0.70710677
        %v525 = vmul.f32 %v427, 0.70710677
        %v526 = vmul.f32 %v429, 0.70710677
        %v527 = vmul.f32 %v433, 0.70710677
        %v528 = vmul.f32 %v435, 0.70710677
        %v529 = vmul.f32 %v439, 0.70710677
        %v530 = vmul.f32 %v441, 0.70710677
        %v531 = vmul.f32 %v445, 0.70710677
        %v532 = vmul.f32 %v447, 0.70710677
        %v533 = vmul.f32 %v451, 0.70710677
        %v534 = vmul.f32 %v453, 0.70710677
        %v535 = vmul.f32 %v457, 0.70710677
        %v536 = vmul.f32 %v459, 0.70710677
        %v537 = vmul.f32 %v463, 0.70710677
        %v538 = vmul.f32 %v465, 0.70710677
        %v539 = vmul.f32 %v469, 0.70710677
        %v540 = vmul.f32 %v471, 0.70710677
        %v541 = vmul.f32 %v475, 0.70710677
        %v542 = vmul.f32 %v477, 0.70710677
        %v543 = verf.f32.pop %v511
        %v544 = verf.f32.pop %v512
        %v545 = verf.f32.pop %v513
        %v546 = verf.f32.pop %v514
        %v547 = verf.f32.pop %v515
        %v548 = verf.f32.pop %v516
        %v549 = verf.f32.pop %v517
        %v550 = verf.f32.pop %v518
        %v551 = verf.f32.pop %v519
        %v552 = verf.f32.pop %v520
        %v553 = verf.f32.pop %v521
        %v554 = verf.f32.pop %v522
        %v555 = verf.f32.pop %v523
        %v556 = verf.f32.pop %v524
        %v557 = verf.f32.pop %v525
        %v558 = verf.f32.pop %v526
        %v559 = verf.f32.pop %v527
        %v560 = verf.f32.pop %v528
        %v561 = verf.f32.pop %v529
        %v562 = verf.f32.pop %v530
        %v563 = verf.f32.pop %v531
        %v564 = verf.f32.pop %v532
        %v565 = verf.f32.pop %v533
        %v566 = verf.f32.pop %v534
        %v567 = verf.f32.pop %v535
        %v568 = verf.f32.pop %v536
        %v569 = verf.f32.pop %v537
        %v570 = verf.f32.pop %v538
        %v571 = verf.f32.pop %v539
        %v572 = verf.f32.pop %v540
        %v573 = verf.f32.pop %v541
        %v574 = verf.f32.pop %v542
        %v575 = vadd.f32 %v543, 1.0
        %v576 = vadd.f32 %v544, 1.0
        %v577 = vadd.f32 %v545, 1.0
        %v578 = vadd.f32 %v546, 1.0
        %v579 = vadd.f32 %v547, 1.0
        %v580 = vadd.f32 %v548, 1.0
        %v581 = vadd.f32 %v549, 1.0
        %v582 = vadd.f32 %v550, 1.0
        %v583 = vadd.f32 %v551, 1.0
        %v584 = vadd.f32 %v552, 1.0
        %v585 = vadd.f32 %v553, 1.0
        %v586 = vadd.f32 %v554, 1.0
        %v587 = vadd.f32 %v555, 1.0
        %v588 = vadd.f32 %v556, 1.0
        %v589 = vadd.f32 %v557, 1.0
        %v590 = vadd.f32 %v558, 1.0
        %v591 = vadd.f32 %v559, 1.0
        %v592 = vadd.f32 %v560, 1.0
        %v593 = vadd.f32 %v561, 1.0
        %v594 = vadd.f32 %v562, 1.0
        %v595 = vadd.f32 %v563, 1.0
        %v596 = vadd.f32 %v564, 1.0
        %v597 = vadd.f32 %v565, 1.0
        %v598 = vadd.f32 %v566, 1.0
        %v599 = vadd.f32 %v567, 1.0
        %v600 = vadd.f32 %v568, 1.0
        %v601 = vadd.f32 %v569, 1.0
        %v602 = vadd.f32 %v570, 1.0
        %v603 = vadd.f32 %v571, 1.0
        %v604 = vadd.f32 %v572, 1.0
        %v605 = vadd.f32 %v573, 1.0
        %v606 = vadd.f32 %v574, 1.0
        %v607 = vmul.f32 %v479, %v575
        %v608 = vmul.f32 %v480, %v576
        %v609 = vmul.f32 %v481, %v577
        %v610 = vmul.f32 %v482, %v578
        %v611 = vmul.f32 %v483, %v579
        %v612 = vmul.f32 %v484, %v580
        %v613 = vmul.f32 %v485, %v581
        %v614 = vmul.f32 %v486, %v582
        %v615 = vmul.f32 %v487, %v583
        %v616 = vmul.f32 %v488, %v584
        %v617 = vmul.f32 %v489, %v585
        %v618 = vmul.f32 %v490, %v586
        %v619 = vmul.f32 %v491, %v587
        %v620 = vmul.f32 %v492, %v588
        %v621 = vmul.f32 %v493, %v589
        %v622 = vmul.f32 %v494, %v590
        %v623 = vmul.f32 %v495, %v591
        %v624 = vmul.f32 %v496, %v592
        %v625 = vmul.f32 %v497, %v593
        %v626 = vmul.f32 %v498, %v594
        %v627 = vmul.f32 %v499, %v595
        %v628 = vmul.f32 %v500, %v596
        %v629 = vmul.f32 %v501, %v597
        %v630 = vmul.f32 %v502, %v598
        %v631 = vmul.f32 %v503, %v599
        %v632 = vmul.f32 %v504, %v600
        %v633 = vmul.f32 %v505, %v601
        %v634 = vmul.f32 %v506, %v602
        %v635 = vmul.f32 %v507, %v603
        %v636 = vmul.f32 %v508, %v604
        %v637 = vmul.f32 %v509, %v605
        %v638 = vmul.f32 %v510, %v606
        %v639 = vld [vmem:[#allocation2] sm:$0xff]
        %v640 = vld [vmem:[#allocation2 + $0x8] sm:$0xff]
        %v641 = vld [vmem:[#allocation2 + $0x10] sm:$0xff]
        %v642 = vld [vmem:[#allocation2 + $0x18] sm:$0xff]
        %v643 = vld [vmem:[#allocation2 + $0x20] sm:$0xff]
        %v644 = vld [vmem:[#allocation2 + $0x28] sm:$0xff]
        %v645 = vld [vmem:[#allocation2 + $0x30] sm:$0xff]
        %v646 = vld [vmem:[#allocation2 + $0x38] sm:$0xff]
        %v647 = vld [vmem:[#allocation2 + $0x40] sm:$0xff]
        %v648 = vld [vmem:[#allocation2 + $0x48] sm:$0xff]
        %v649 = vld [vmem:[#allocation2 + $0x50] sm:$0xff]
        %v650 = vld [vmem:[#allocation2 + $0x58] sm:$0xff]
        %v651 = vld [vmem:[#allocation2 + $0x60] sm:$0xff]
        %v652 = vld [vmem:[#allocation2 + $0x68] sm:$0xff]
        %v653 = vld [vmem:[#allocation2 + $0x70] sm:$0xff]
        %v654 = vld [vmem:[#allocation2 + $0x78] sm:$0xff]
        %v655 = vld [vmem:[#allocation8] sm:$0xff]
        %v656 = vld [vmem:[#allocation8 + $0x8] sm:$0xff]
        %v657 = vld [vmem:[#allocation8 + $0x10] sm:$0xff]
        %v658 = vld [vmem:[#allocation8 + $0x18] sm:$0xff]
        %v659 = vld [vmem:[#allocation8 + $0x20] sm:$0xff]
        %v660 = vld [vmem:[#allocation8 + $0x28] sm:$0xff]
        %v661 = vld [vmem:[#allocation8 + $0x30] sm:$0xff]
        %v662 = vld [vmem:[#allocation8 + $0x38] sm:$0xff]
        %v663 = vld [vmem:[#allocation8 + $0x40] sm:$0xff]
        %v664 = vld [vmem:[#allocation8 + $0x48] sm:$0xff]
        %v665 = vld [vmem:[#allocation8 + $0x50] sm:$0xff]
        %v666 = vld [vmem:[#allocation8 + $0x58] sm:$0xff]
        %v667 = vld [vmem:[#allocation8 + $0x60] sm:$0xff]
        %v668 = vld [vmem:[#allocation8 + $0x68] sm:$0xff]
        %v669 = vld [vmem:[#allocation8 + $0x70] sm:$0xff]
        %v670 = vld [vmem:[#allocation8 + $0x78] sm:$0xff]
        %v671 = vld [vmem:[#allocation8 + $0x80] sm:$0xff]
        %v672 = vld [vmem:[#allocation8 + $0x88] sm:$0xff]
        %v673 = vld [vmem:[#allocation8 + $0x90] sm:$0xff]
        %v674 = vld [vmem:[#allocation8 + $0x98] sm:$0xff]
        %v675 = vld [vmem:[#allocation8 + $0xa0] sm:$0xff]
        %v676 = vld [vmem:[#allocation8 + $0xa8] sm:$0xff]
        %v677 = vld [vmem:[#allocation8 + $0xb0] sm:$0xff]
        %v678 = vld [vmem:[#allocation8 + $0xb8] sm:$0xff]
        %v679 = vld [vmem:[#allocation8 + $0xc0] sm:$0xff]
        %v680 = vld [vmem:[#allocation8 + $0xc8] sm:$0xff]
        %v681 = vld [vmem:[#allocation8 + $0xd0] sm:$0xff]
        %v682 = vld [vmem:[#allocation8 + $0xd8] sm:$0xff]
        %v683 = vld [vmem:[#allocation8 + $0xe0] sm:$0xff]
        %v684 = vld [vmem:[#allocation8 + $0xe8] sm:$0xff]
        %v685 = vld [vmem:[#allocation8 + $0xf0] sm:$0xff]
        %v686 = vld [vmem:[#allocation8 + $0xf8] sm:$0xff]
        %687 = vmatprep.subr.mxu0 %v656
        %688 = vmatpush1.xpose.msra.mxu0 %v655
        %689 = vmatprep.subr.mxu0 %v658
        %690 = vmatpush1.xpose.msra.mxu0 %v657
        %691 = vmatprep.subr.mxu0 %v660
        %692 = vmatpush1.xpose.msra.mxu0 %v659
        %693 = vmatprep.subr.mxu0 %v662
        %694 = vmatpush1.xpose.msra.mxu0 %v661
        %695 = vmatprep.subr.mxu0 %v664
        %696 = vmatpush1.xpose.msra.mxu0 %v663
        %697 = vmatprep.subr.mxu0 %v666
        %698 = vmatpush1.xpose.msra.mxu0 %v665
        %699 = vmatprep.subr.mxu0 %v668
        %700 = vmatpush1.xpose.msra.mxu0 %v667
        %701 = vmatprep.subr.mxu0 %v670
        %702 = vmatpush1.xpose.msra.mxu0 %v669
        %703 = vmatprep.subr.mxu0 %v672
        %704 = vmatpush1.xpose.msra.mxu0 %v671
        %705 = vmatprep.subr.mxu0 %v674
        %706 = vmatpush1.xpose.msra.mxu0 %v673
        %707 = vmatprep.subr.mxu0 %v676
        %708 = vmatpush1.xpose.msra.mxu0 %v675
        %709 = vmatprep.subr.mxu0 %v678
        %710 = vmatpush1.xpose.msra.mxu0 %v677
        %711 = vmatprep.subr.mxu0 %v680
        %712 = vmatpush1.xpose.msra.mxu0 %v679
        %713 = vmatprep.subr.mxu0 %v682
        %714 = vmatpush1.xpose.msra.mxu0 %v681
        %715 = vmatprep.subr.mxu0 %v684
        %716 = vmatpush1.xpose.msra.mxu0 %v683
        %717 = vmatprep.subr.mxu0 %v686
        %718 = vmatpush1.xpose.msra.mxu0 %v685
        %719 = vmatprep.subr.mxu0 0.0
        %720 = vmatpush1.xpose.msra.mxu0 0.0
        %721 = vmatprep.subr.mxu0 0.0
        %722 = vmatpush1.xpose.msra.mxu0 0.0
        %723 = vmatprep.subr.mxu0 0.0
        %724 = vmatpush1.xpose.msra.mxu0 0.0
        %725 = vmatprep.subr.mxu0 0.0
        %726 = vmatpush1.xpose.msra.mxu0 0.0
        %727 = vmatprep.subr.mxu0 0.0
        %728 = vmatpush1.xpose.msra.mxu0 0.0
        %729 = vmatprep.subr.mxu0 0.0
        %730 = vmatpush1.xpose.msra.mxu0 0.0
        %731 = vmatprep.subr.mxu0 0.0
        %732 = vmatpush1.xpose.msra.mxu0 0.0
        %733 = vmatprep.subr.mxu0 0.0
        %734 = vmatpush1.xpose.msra.mxu0 0.0
        %735 = vmatprep.subr.mxu0 0.0
        %736 = vmatpush1.xpose.msra.mxu0 0.0
        %737 = vmatprep.subr.mxu0 0.0
        %738 = vmatpush1.xpose.msra.mxu0 0.0
        %739 = vmatprep.subr.mxu0 0.0
        %740 = vmatpush1.xpose.msra.mxu0 0.0
        %741 = vmatprep.subr.mxu0 0.0
        %742 = vmatpush1.xpose.msra.mxu0 0.0
        %743 = vmatprep.subr.mxu0 0.0
        %744 = vmatpush1.xpose.msra.mxu0 0.0
        %745 = vmatprep.subr.mxu0 0.0
        %746 = vmatpush1.xpose.msra.mxu0 0.0
        %747 = vmatprep.subr.mxu0 0.0
        %748 = vmatpush1.xpose.msra.mxu0 0.0
        %749 = vmatprep.subr.mxu0 0.0
        %750 = vmatpush1.xpose.msra.mxu0 0.0
        %751 = vmatprep.mubr.f32.mxu0 %v608
        %752 = vmatmul.mubr.f32.gmra.mrb[0].mxu0 %v607
        %v753 = vpop.f32.mrb[0].mxu0
        %v754 = vadd.f32 0.0, %v753
        %v755 = vpop.f32.mrb[0].mxu0
        %756 = vmatprep.mubr.f32.mxu0 %v610
        %757 = vmatmul.mubr.f32.gmra.mrb[0].mxu0 %v609
        %v758 = vpop.f32.mrb[0].mxu0
        %v759 = vadd.f32 0.0, %v758
        %v760 = vpop.f32.mrb[0].mxu0
        %761 = vmatprep.mubr.f32.mxu0 %v612
        %762 = vmatmul.mubr.f32.gmra.mrb[0].mxu0 %v611
        %v763 = vpop.f32.mrb[0].mxu0
        %v764 = vadd.f32 0.0, %v763
        %v765 = vpop.f32.mrb[0].mxu0
        %766 = vmatprep.mubr.f32.mxu0 %v614
        %767 = vmatmul.mubr.f32.gmra.mrb[0].mxu0 %v613
        %v768 = vpop.f32.mrb[0].mxu0
        %v769 = vadd.f32 0.0, %v768
        %v770 = vpop.f32.mrb[0].mxu0
        %771 = vmatprep.mubr.f32.mxu0 %v616
        %772 = vmatmul.mubr.f32.gmra.mrb[0].mxu0 %v615
        %v773 = vpop.f32.mrb[0].mxu0
        %v774 = vadd.f32 0.0, %v773
        %v775 = vpop.f32.mrb[0].mxu0
        %776 = vmatprep.mubr.f32.mxu0 %v618
        %777 = vmatmul.mubr.f32.gmra.mrb[0].mxu0 %v617
        %v778 = vpop.f32.mrb[0].mxu0
        %v779 = vadd.f32 0.0, %v778
        %v780 = vpop.f32.mrb[0].mxu0
        %781 = vmatprep.mubr.f32.mxu0 %v620
        %782 = vmatmul.mubr.f32.gmra.mrb[0].mxu0 %v619
        %v783 = vpop.f32.mrb[0].mxu0
        %v784 = vadd.f32 0.0, %v783
        %v785 = vpop.f32.mrb[0].mxu0
        %786 = vmatprep.mubr.f32.mxu0 %v622
        %787 = vmatmul.mubr.f32.gmra.mrb[0].mxu0 %v621
        %v788 = vpop.f32.mrb[0].mxu0
        %v789 = vadd.f32 0.0, %v788
        %v790 = vpop.f32.mrb[0].mxu0
        %791 = vmatprep.mubr.f32.mxu0 %v624
        %792 = vmatmul.mubr.f32.gmra.mrb[0].mxu0 %v623
        %v793 = vpop.f32.mrb[0].mxu0
        %v794 = vadd.f32 0.0, %v793
        %v795 = vpop.f32.mrb[0].mxu0
        %796 = vmatprep.mubr.f32.mxu0 %v626
        %797 = vmatmul.mubr.f32.gmra.mrb[0].mxu0 %v625
        %v798 = vpop.f32.mrb[0].mxu0
        %v799 = vadd.f32 0.0, %v798
        %v800 = vpop.f32.mrb[0].mxu0
        %801 = vmatprep.mubr.f32.mxu0 %v628
        %802 = vmatmul.mubr.f32.gmra.mrb[0].mxu0 %v627
        %v803 = vpop.f32.mrb[0].mxu0
        %v804 = vadd.f32 0.0, %v803
        %v805 = vpop.f32.mrb[0].mxu0
        %806 = vmatprep.mubr.f32.mxu0 %v630
        %807 = vmatmul.mubr.f32.gmra.mrb[0].mxu0 %v629
        %v808 = vpop.f32.mrb[0].mxu0
        %v809 = vadd.f32 0.0, %v808
        %v810 = vpop.f32.mrb[0].mxu0
        %811 = vmatprep.mubr.f32.mxu0 %v632
        %812 = vmatmul.mubr.f32.gmra.mrb[0].mxu0 %v631
        %v813 = vpop.f32.mrb[0].mxu0
        %v814 = vadd.f32 0.0, %v813
        %v815 = vpop.f32.mrb[0].mxu0
        %816 = vmatprep.mubr.f32.mxu0 %v634
        %817 = vmatmul.mubr.f32.gmra.mrb[0].mxu0 %v633
        %v818 = vpop.f32.mrb[0].mxu0
        %v819 = vadd.f32 0.0, %v818
        %v820 = vpop.f32.mrb[0].mxu0
        %821 = vmatprep.mubr.f32.mxu0 %v636
        %822 = vmatmul.mubr.f32.gmra.mrb[0].mxu0 %v635
        %v823 = vpop.f32.mrb[0].mxu0
        %v824 = vadd.f32 0.0, %v823
        %v825 = vpop.f32.mrb[0].mxu0
        %826 = vmatprep.mubr.f32.mxu0 %v638
        %827 = vmatmul.mubr.f32.gmra.mrb[0].mxu0 %v637
        %v828 = vpop.f32.mrb[0].mxu0
        %v829 = vadd.f32 0.0, %v828
        %v830 = vpop.f32.mrb[0].mxu0
        %831 = vdwg.mxu0
        %v832 = vadd.f32 %v639, %v754
        %v833 = vadd.f32 %v640, %v759
        %v834 = vadd.f32 %v641, %v764
        %v835 = vadd.f32 %v642, %v769
        %v836 = vadd.f32 %v643, %v774
        %v837 = vadd.f32 %v644, %v779
        %v838 = vadd.f32 %v645, %v784
        %v839 = vadd.f32 %v646, %v789
        %v840 = vadd.f32 %v647, %v794
        %v841 = vadd.f32 %v648, %v799
        %v842 = vadd.f32 %v649, %v804
        %v843 = vadd.f32 %v650, %v809
        %v844 = vadd.f32 %v651, %v814
        %v845 = vadd.f32 %v652, %v819
        %v846 = vadd.f32 %v653, %v824
        %v847 = vadd.f32 %v654, %v829
        %848 = vst [vmem:[#allocation2] sm:$0xff] %v832
        %849 = vst [vmem:[#allocation2 + $0x8] sm:$0xff] %v833
        %850 = vst [vmem:[#allocation2 + $0x10] sm:$0xff] %v834
        %851 = vst [vmem:[#allocation2 + $0x18] sm:$0xff] %v835
        %852 = vst [vmem:[#allocation2 + $0x20] sm:$0xff] %v836
        %853 = vst [vmem:[#allocation2 + $0x28] sm:$0xff] %v837
        %854 = vst [vmem:[#allocation2 + $0x30] sm:$0xff] %v838
        %855 = vst [vmem:[#allocation2 + $0x38] sm:$0xff] %v839
        %856 = vst [vmem:[#allocation2 + $0x40] sm:$0xff] %v840
        %857 = vst [vmem:[#allocation2 + $0x48] sm:$0xff] %v841
        %858 = vst [vmem:[#allocation2 + $0x50] sm:$0xff] %v842
        %859 = vst [vmem:[#allocation2 + $0x58] sm:$0xff] %v843
        %860 = vst [vmem:[#allocation2 + $0x60] sm:$0xff] %v844
        %861 = vst [vmem:[#allocation2 + $0x68] sm:$0xff] %v845
        %862 = vst [vmem:[#allocation2 + $0x70] sm:$0xff] %v846
        %863 = vst [vmem:[#allocation2 + $0x78] sm:$0xff] %v847
        // Predicated region
        $region49: #{ffn_forward.2} parent=31 // pred_check
          %p864 = pneg %p250
        $region50: #{ffn_forward.2} parent=31 // pred_check_branch
          %866 = sbr.rel (%p864) target = $region52
        $region51: #{ffn_forward.2} parent=31 // pred_region
          %v867 = vld [vmem:[#allocation2] sm:$0xff]
          %v868 = vld [vmem:[#allocation2 + $0x8] sm:$0xff]
          %v869 = vld [vmem:[#allocation2 + $0x10] sm:$0xff]
          %v870 = vld [vmem:[#allocation2 + $0x18] sm:$0xff]
          %v871 = vld [vmem:[#allocation2 + $0x20] sm:$0xff]
          %v872 = vld [vmem:[#allocation2 + $0x28] sm:$0xff]
          %v873 = vld [vmem:[#allocation2 + $0x30] sm:$0xff]
          %v874 = vld [vmem:[#allocation2 + $0x38] sm:$0xff]
          %v875 = vld [vmem:[#allocation2 + $0x40] sm:$0xff]
          %v876 = vld [vmem:[#allocation2 + $0x48] sm:$0xff]
          %v877 = vld [vmem:[#allocation2 + $0x50] sm:$0xff]
          %v878 = vld [vmem:[#allocation2 + $0x58] sm:$0xff]
          %v879 = vld [vmem:[#allocation2 + $0x60] sm:$0xff]
          %v880 = vld [vmem:[#allocation2 + $0x68] sm:$0xff]
          %v881 = vld [vmem:[#allocation2 + $0x70] sm:$0xff]
          %v882 = vld [vmem:[#allocation2 + $0x78] sm:$0xff]
          %883 = vst [vmem:[%s245] sm:$0xff] %v867
          %884 = vst [vmem:[%s245 + $0x8] sm:$0xff] %v868
          %885 = vst [vmem:[%s245 + $0x10] sm:$0xff] %v869
          %886 = vst [vmem:[%s245 + $0x18] sm:$0xff] %v870
          %887 = vst [vmem:[%s245 + $0x20] sm:$0xff] %v871
          %888 = vst [vmem:[%s245 + $0x28] sm:$0xff] %v872
          %889 = vst [vmem:[%s245 + $0x30] sm:$0xff] %v873
          %890 = vst [vmem:[%s245 + $0x38] sm:$0xff] %v874
          %891 = vst [vmem:[%s245 + $0x40] sm:$0xff] %v875
          %892 = vst [vmem:[%s245 + $0x48] sm:$0xff] %v876
          %893 = vst [vmem:[%s245 + $0x50] sm:$0xff] %v877
          %894 = vst [vmem:[%s245 + $0x58] sm:$0xff] %v878
          %895 = vst [vmem:[%s245 + $0x60] sm:$0xff] %v879
          %896 = vst [vmem:[%s245 + $0x68] sm:$0xff] %v880
          %897 = vst [vmem:[%s245 + $0x70] sm:$0xff] %v881
          %898 = vst [vmem:[%s245 + $0x78] sm:$0xff] %v882
        $region52: #{ffn_forward.2} parent=31 // pred_fallthru
          _
        %s899 = sand.u32 %s119, 1
        %s900 = scalar_lea.sflag [#allocation5], %s899
        %s901 = sand.u32 %s119, 1
        %s902 = smul.addr %s901, 128
        %s903 = scalar_lea.vmem [#allocation9], %s902
        // Predicated region
        $region53: #{ffn_forward.2} parent=31 // pred_check
          %p904 = pneg %p129
        $region54: #{ffn_forward.2} parent=31 // pred_check_branch
          %906 = sbr.rel (%p904) target = $region56
        $region55: #{ffn_forward.2} parent=31 // pred_region
          %s907 = smul.u32 16, %s25
          %s909 = ssub.s32 2048, 2048
          %910 = vsyncadd %s900, %s909
          %s911 = smul.addr %s907, 128
          %s912 = scalar_lea.hbm %s3, %s911
          %s913 = sshll.u32 %s903, 4
          %s914 = int_to_ptr.vmem [resolvable:$true] %s913
          %919 = dma.vmem_to_hbm [thread:$0]  %s914, 2048, %s912, %s900, 128, 128, 8
        $region56: #{ffn_forward.2} parent=31 // pred_fallthru
          _
      $region32: #{ffn_forward.2} parent=5 // pred_fallthru
        _
      %p920 = scmp.le.s32.totalorder 2, %s16
      // Predicated region
      $region57: #{ffn_forward.2} parent=5 // pred_check
        %p921 = pneg %p920
      $region58: #{ffn_forward.2} parent=5 // pred_check_branch
        %923 = sbr.rel (%p921) target = $region60
      $region59: #{ffn_forward.2} parent=5 // pred_region
        %s924 = ssub.s32 %s16, 2
        // Predicated region
        $region61: #{ffn_forward.2} parent=59 // pred_check
          %p925 = pneg %p135
        $region62: #{ffn_forward.2} parent=59 // pred_check_branch
          %927 = sbr.rel (%p925) target = $region64
        $region63: #{ffn_forward.2} parent=59 // pred_region
          %s928 = sand.u32 %s120, 1
          %s929 = scalar_lea.sflag [#allocation5], %s928
          %s930 = sand.u32 %s120, 1
          %s931 = smul.addr %s930, 128
          %s932 = scalar_lea.vmem [#allocation9], %s931
          %933 = dma.done %s929, 2048
        $region64: #{ffn_forward.2} parent=59 // pred_fallthru
          _
      $region60: #{ffn_forward.2} parent=5 // pred_fallthru
        _
    $region6: #{ffn_forward.2} parent=1 // loop_footer
      %s20 = sadd.s32 1, %s16
    $region7: #{ffn_forward.2} parent=1 // loop_footer_branch
      %15 = sbr.rel target = $region3
    $region8: #{ffn_forward.2} parent=1 // loop_exit
      _
    %934 = vsyncpa [#allocation4], 1
    %s935 = scalar_lea.sflag [#allocation4], 1
    %936 = vsyncpa %s935, 1
    %937 = vsyncpa [#allocation7], 1
    %938 = vsyncpa [#allocation5], 1
    %s939 = scalar_lea.sflag [#allocation5], 1
    %940 = vsyncpa %s939, 1

// kernel: ffn_forward.3
$region0: #{ffn_forward.3}
  #allocation0 [shape = 'u32[]', space=smem, size = 0x4, offset = 0x4, fixed_abs, tag = 'smem constant byte address 0x4 - core index']
  #allocation1 [shape = 'u32[144,128]{1,0:T(1,128)}', space=vmem, size = 0x12000, scoped, tag = 'internal scratch']
  #allocation2 [shape = 'f32[128,128]{1,0:T(8,128)}', space=vmem, size = 0x10000, scoped, tag = 'scratch operand']
  %s0 = inlined_call_operand.vmem [shape: f32[256,128], index: 0, kind: input, shape index: {}]
  %s1 = inlined_call_operand.vmem [shape: f32[256,128], index: 1, kind: input, shape index: {}]
  %s2 = inlined_call_operand.vmem [shape: f32[128,256], index: 2, kind: input, shape index: {}]
  %s3 = inlined_call_operand.hbm [shape: f32[256,128], index: 3, kind: output, shape index: {}]
  %s4 = sld [smem:[#allocation0]]
  $region53: #{ffn_forward.3} parent=0
    _
  %s6 = ssub.s32 1, %s4
  %s7 = scalar_select 0, %s6, %s4
  $region1: #{ffn_forward.3} parent=0
    #allocation3 [shape = 'u8[131072]{0}', space=vmem, size = 0x20000, scoped, tag = 'output window, operand 0']
    #allocation4 [shape = 's32[2]{0}', space=sflag, size = 0x8, scoped, tag = 'scoped memory for ffn_forward.3']
    %8 = vsyncpa [#allocation4], 0
    %s9 = scalar_lea.sflag [#allocation4], 1
    %10 = vsyncpa %s9, 0
    loop: start=0, step=1, limit=4
    $region2: #{ffn_forward.3} parent=1 // loop_pre_header
      _
    $region3: #{ffn_forward.3} parent=1 // loop_header
      %s12 = sphi 0, %s16
      %p13 = scmp.ge.s32.totalorder %s12, 4
      %s19 = sphi 0, %s31
      %s20 = sphi 0, %s27
      %s21 = sphi 0, %s19
      %s22 = sphi 0, %s20
      %s23 = sphi 0, %s21
      %s24 = sphi 0, %s22
      %s34 = sphi 0, %s36
      %s37 = sphi 0, %s34
      %s38 = sphi 0, %s37
      %s54 = sphi 0, %s38
      %s60 = sphi 0, %s62
      %s63 = sphi 0, %s60
      %s64 = sphi 0, %s63
      %s80 = sphi 0, %s64
      %s86 = sphi 0, %s88
      %s89 = sphi 0, %s86
      %s90 = sphi 0, %s89
      %s106 = sphi 0, %s90
      %s112 = sphi 0, %s114
      %s115 = sphi 0, %s112
      %s116 = sphi 0, %s115
      %s132 = sphi 0, %s116
    $region4: #{ffn_forward.3} parent=1 // loop_header_branch
      %15 = sbr.rel (%p13) target = $region8
    $region5: #{ffn_forward.3} parent=1 // loop_body
      %s17 = ssub.s32 %s12, 1
      %s18 = ssub.s32 %s12, 2
      %s25 = sadd.s32 1, %s20
      %p26 = scmp.ge.s32.totalorder %s25, 1
      %s27 = scalar_select %p26, 0, %s25
      %s28 = sadd.s32 1, %s19
      %s29 = scalar_select %p26, %s28, %s19
      %p30 = scmp.ge.s32.totalorder %s29, 2
      %s31 = scalar_select %p30, 0, %s29
      %s32 = ssub.s32 %s19, %s31
      %p33 = scmp.eq.s32.totalorder %s32, 0
      %s35 = sadd.s32 %s34, 1
      %s36 = scalar_select %p33, %s34, %s35
      %p39 = pneg %p33
      %p40 = scmp.eq.s32.totalorder %s12, 1
      %p41 = por %p39, %p40
      %p42 = scmp.ne.s32.totalorder %s34, %s37
      %p43 = scmp.eq.s32.totalorder %s12, 0
      %p44 = por %p42, %p43
      %p45 = scmp.ne.s32.totalorder %s34, %s37
      %p46 = scmp.eq.s32.totalorder %s17, 1
      %p47 = por %p45, %p46
      %p48 = scmp.ne.s32.totalorder %s37, %s38
      %p49 = scmp.eq.s32.totalorder %s17, 0
      %p50 = por %p48, %p49
      %p51 = scmp.ne.s32.totalorder %s37, %s38
      %p52 = scmp.eq.s32.totalorder %s18, 1
      %p53 = por %p51, %p52
      %p55 = scmp.ne.s32.totalorder %s38, %s54
      %p56 = scmp.eq.s32.totalorder %s18, 0
      %p57 = por %p55, %p56
      %s58 = ssub.s32 %s20, %s27
      %p59 = scmp.eq.s32.totalorder %s58, 0
      %s61 = sadd.s32 %s60, 1
      %s62 = scalar_select %p59, %s60, %s61
      %p65 = pneg %p59
      %p66 = scmp.eq.s32.totalorder %s12, 1
      %p67 = por %p65, %p66
      %p68 = scmp.ne.s32.totalorder %s60, %s63
      %p69 = scmp.eq.s32.totalorder %s12, 0
      %p70 = por %p68, %p69
      %p71 = scmp.ne.s32.totalorder %s60, %s63
      %p72 = scmp.eq.s32.totalorder %s17, 1
      %p73 = por %p71, %p72
      %p74 = scmp.ne.s32.totalorder %s63, %s64
      %p75 = scmp.eq.s32.totalorder %s17, 0
      %p76 = por %p74, %p75
      %p77 = scmp.ne.s32.totalorder %s63, %s64
      %p78 = scmp.eq.s32.totalorder %s18, 1
      %p79 = por %p77, %p78
      %p81 = scmp.ne.s32.totalorder %s64, %s80
      %p82 = scmp.eq.s32.totalorder %s18, 0
      %p83 = por %p81, %p82
      %s84 = ssub.s32 %s20, %s27
      %p85 = scmp.eq.s32.totalorder %s84, 0
      %s87 = sadd.s32 %s86, 1
      %s88 = scalar_select %p85, %s86, %s87
      %p91 = pneg %p85
      %p92 = scmp.eq.s32.totalorder %s12, 1
      %p93 = por %p91, %p92
      %p94 = scmp.ne.s32.totalorder %s86, %s89
      %p95 = scmp.eq.s32.totalorder %s12, 0
      %p96 = por %p94, %p95
      %p97 = scmp.ne.s32.totalorder %s86, %s89
      %p98 = scmp.eq.s32.totalorder %s17, 1
      %p99 = por %p97, %p98
      %p100 = scmp.ne.s32.totalorder %s89, %s90
      %p101 = scmp.eq.s32.totalorder %s17, 0
      %p102 = por %p100, %p101
      %p103 = scmp.ne.s32.totalorder %s89, %s90
      %p104 = scmp.eq.s32.totalorder %s18, 1
      %p105 = por %p103, %p104
      %p107 = scmp.ne.s32.totalorder %s90, %s106
      %p108 = scmp.eq.s32.totalorder %s18, 0
      %p109 = por %p107, %p108
      %s110 = ssub.s32 %s19, %s31
      %p111 = scmp.eq.s32.totalorder %s110, 0
      %s113 = sadd.s32 %s112, 1
      %s114 = scalar_select %p111, %s112, %s113
      %p117 = pneg %p111
      %p118 = scmp.eq.s32.totalorder %s12, 1
      %p119 = por %p117, %p118
      %p120 = scmp.ne.s32.totalorder %s112, %s115
      %p121 = scmp.eq.s32.totalorder %s12, 0
      %p122 = por %p120, %p121
      %p123 = scmp.ne.s32.totalorder %s112, %s115
      %p124 = scmp.eq.s32.totalorder %s17, 1
      %p125 = por %p123, %p124
      %p126 = scmp.ne.s32.totalorder %s115, %s116
      %p127 = scmp.eq.s32.totalorder %s17, 0
      %p128 = por %p126, %p127
      %p129 = scmp.ne.s32.totalorder %s115, %s116
      %p130 = scmp.eq.s32.totalorder %s18, 1
      %p131 = por %p129, %p130
      %p133 = scmp.ne.s32.totalorder %s116, %s132
      %p134 = scmp.eq.s32.totalorder %s18, 0
      %p135 = por %p133, %p134
      %p136 = scmp.le.s32.totalorder 1, %s12
      %p137 = scmp.lt.s32.totalorder %s12, 3
      %p138 = pnand %p136, %p137
      %p139 = pneg %p138
      // Predicated region
      $region9: #{ffn_forward.3} parent=5 // pred_check
        _
      $region10: #{ffn_forward.3} parent=5 // pred_check_branch
        %141 = sbr.rel (%p138) target = $region12
      $region11: #{ffn_forward.3} parent=5 // pred_region
        %s142 = ssub.s32 %s12, 1
        // Predicated region
        $region13: #{ffn_forward.3} parent=11 // pred_check
          %p143 = pneg %p76
        $region14: #{ffn_forward.3} parent=11 // pred_check_branch
          %145 = sbr.rel (%p143) target = $region16
        $region15: #{ffn_forward.3} parent=11 // pred_region
          %s146 = smul.u32 32, %s22
          %p147 = scmp.lt.s32.totalorder %s146, 31
          %s148 = scalar_select %p147, %s146, 31
          %s149 = smul.addr %s148, 8
          %s150 = scalar_lea.vmem %s1, %s149
          %s151 = smul.u32 32, %s22
        $region16: #{ffn_forward.3} parent=11 // pred_fallthru
          _
        // Predicated region
        $region17: #{ffn_forward.3} parent=11 // pred_check
          %p152 = pneg %p102
        $region18: #{ffn_forward.3} parent=11 // pred_check_branch
          %154 = sbr.rel (%p152) target = $region20
        $region19: #{ffn_forward.3} parent=11 // pred_region
          %s155 = smul.u32 2, %s22
          %p156 = scmp.lt.s32.totalorder %s155, 1
          %s157 = scalar_select %p156, %s155, 1
          %s158 = smul.addr %s157, 8
          %s159 = scalar_lea.vmem %s2, %s158
          %s160 = smul.u32 2, %s22
        $region20: #{ffn_forward.3} parent=11 // pred_fallthru
          _
      $region12: #{ffn_forward.3} parent=5 // pred_fallthru
        _
      %p161 = scmp.lt.s32.totalorder %s12, 2
      // Predicated region
      $region21: #{ffn_forward.3} parent=5 // pred_check
        %p162 = pneg %p161
      $region22: #{ffn_forward.3} parent=5 // pred_check_branch
        %164 = sbr.rel (%p162) target = $region24
      $region23: #{ffn_forward.3} parent=5 // pred_region
        // Predicated region
        $region25: #{ffn_forward.3} parent=23 // pred_check
          %p165 = pneg %p44
        $region26: #{ffn_forward.3} parent=23 // pred_check_branch
          %167 = sbr.rel (%p165) target = $region28
        $region27: #{ffn_forward.3} parent=23 // pred_region
          %s168 = smul.u32 16, %s19
          %p169 = scmp.lt.s32.totalorder %s168, 31
          %s170 = scalar_select %p169, %s168, 31
          %s171 = smul.addr %s170, 8
          %s172 = scalar_lea.vmem %s0, %s171
          %s173 = smul.u32 16, %s19
        $region28: #{ffn_forward.3} parent=23 // pred_fallthru
          _
      $region24: #{ffn_forward.3} parent=5 // pred_fallthru
        _
      %p174 = scmp.le.s32.totalorder 1, %s12
      %p175 = scmp.lt.s32.totalorder %s12, 3
      %p176 = pnand %p174, %p175
      %p177 = pneg %p176
      // Predicated region
      $region29: #{ffn_forward.3} parent=5 // pred_check
        _
      $region30: #{ffn_forward.3} parent=5 // pred_check_branch
        %179 = sbr.rel (%p176) target = $region32
      $region31: #{ffn_forward.3} parent=5 // pred_region
        %s180 = ssub.s32 %s12, 1
        %s181 = smul.u32 16, %s21
        %p182 = scmp.lt.s32.totalorder %s181, 31
        %s183 = scalar_select %p182, %s181, 31
        %s184 = smul.addr %s183, 8
        %s185 = scalar_lea.vmem %s0, %s184
        %p186 = pneg %p50
        %p187 = pneg %p47
        %s188 = smul.u32 32, %s22
        %p189 = scmp.lt.s32.totalorder %s188, 31
        %s190 = scalar_select %p189, %s188, 31
        %s191 = smul.addr %s190, 8
        %s192 = scalar_lea.vmem %s1, %s191
        %p193 = pneg %p76
        %p194 = pneg %p73
        %s195 = smul.u32 2, %s22
        %p196 = scmp.lt.s32.totalorder %s195, 1
        %s197 = scalar_select %p196, %s195, 1
        %s198 = smul.addr %s197, 8
        %s199 = scalar_lea.vmem %s2, %s198
        %p200 = pneg %p102
        %p201 = pneg %p99
        %p202 = pneg %p128
        %p203 = pneg %p125
        %s204 = sand.u32 %s115, 1
        %s205 = scalar_lea.sflag [#allocation4], %s204
        %s206 = sand.u32 %s115, 1
        %s207 = smul.addr %s206, 128
        %s208 = scalar_lea.vmem [#allocation3], %s207
        %s209 = smul.u32 16, %s21
        %p210 = scmp.lt.s32.totalorder %s209, 31
        %s211 = scalar_select %p210, %s209, 31
        %s212 = smul.addr %s211, 8
        %s213 = scalar_lea.vmem %s0, %s212
        %s214 = smul.u32 16, %s21
        %s215 = smul.u32 32, %s22
        %p216 = scmp.lt.s32.totalorder %s215, 31
        %s217 = scalar_select %p216, %s215, 31
        %s218 = smul.addr %s217, 8
        %s219 = scalar_lea.vmem %s1, %s218
        %s220 = smul.u32 32, %s22
        %s221 = smul.u32 2, %s22
        %p222 = scmp.lt.s32.totalorder %s221, 1
        %s223 = scalar_select %p222, %s221, 1
        %s224 = smul.addr %s223, 8
        %s225 = scalar_lea.vmem %s2, %s224
        %s226 = smul.u32 2, %s22
        %s227 = smul.u32 16, %s21
        %p228 = scmp.eq.s32.totalorder %s22, 0
        // Predicated region
        $region33: #{ffn_forward.3} parent=31 // pred_check
          %p229 = pneg %p228
        $region34: #{ffn_forward.3} parent=31 // pred_check_branch
          %231 = sbr.rel (%p229) target = $region36
        $region35: #{ffn_forward.3} parent=31 // pred_region
          %232 = vst [vmem:[#allocation2] sm:$0xff] 0.0
          %233 = vst [vmem:[#allocation2 + $0x8] sm:$0xff] 0.0
          %234 = vst [vmem:[#allocation2 + $0x10] sm:$0xff] 0.0
          %235 = vst [vmem:[#allocation2 + $0x18] sm:$0xff] 0.0
          %236 = vst [vmem:[#allocation2 + $0x20] sm:$0xff] 0.0
          %237 = vst [vmem:[#allocation2 + $0x28] sm:$0xff] 0.0
          %238 = vst [vmem:[#allocation2 + $0x30] sm:$0xff] 0.0
          %239 = vst [vmem:[#allocation2 + $0x38] sm:$0xff] 0.0
          %240 = vst [vmem:[#allocation2 + $0x40] sm:$0xff] 0.0
          %241 = vst [vmem:[#allocation2 + $0x48] sm:$0xff] 0.0
          %242 = vst [vmem:[#allocation2 + $0x50] sm:$0xff] 0.0
          %243 = vst [vmem:[#allocation2 + $0x58] sm:$0xff] 0.0
          %244 = vst [vmem:[#allocation2 + $0x60] sm:$0xff] 0.0
          %245 = vst [vmem:[#allocation2 + $0x68] sm:$0xff] 0.0
          %246 = vst [vmem:[#allocation2 + $0x70] sm:$0xff] 0.0
          %247 = vst [vmem:[#allocation2 + $0x78] sm:$0xff] 0.0
        $region36: #{ffn_forward.3} parent=31 // pred_fallthru
          _
        %v248 = vld [vmem:[%s213] sm:$0xff]
        %v249 = vld [vmem:[%s213 + $0x8] sm:$0xff]
        %v250 = vld [vmem:[%s213 + $0x10] sm:$0xff]
        %v251 = vld [vmem:[%s213 + $0x18] sm:$0xff]
        %v252 = vld [vmem:[%s213 + $0x20] sm:$0xff]
        %v253 = vld [vmem:[%s213 + $0x28] sm:$0xff]
        %v254 = vld [vmem:[%s213 + $0x30] sm:$0xff]
        %v255 = vld [vmem:[%s213 + $0x38] sm:$0xff]
        %v256 = vld [vmem:[%s213 + $0x40] sm:$0xff]
        %v257 = vld [vmem:[%s213 + $0x48] sm:$0xff]
        %v258 = vld [vmem:[%s213 + $0x50] sm:$0xff]
        %v259 = vld [vmem:[%s213 + $0x58] sm:$0xff]
        %v260 = vld [vmem:[%s213 + $0x60] sm:$0xff]
        %v261 = vld [vmem:[%s213 + $0x68] sm:$0xff]
        %v262 = vld [vmem:[%s213 + $0x70] sm:$0xff]
        %v263 = vld [vmem:[%s213 + $0x78] sm:$0xff]
        %v264 = vld [vmem:[%s219] sm:$0xff]
        %v265 = vld [vmem:[%s219 + $0x8] sm:$0xff]
        %v266 = vld [vmem:[%s219 + $0x10] sm:$0xff]
        %v267 = vld [vmem:[%s219 + $0x18] sm:$0xff]
        %v268 = vld [vmem:[%s219 + $0x20] sm:$0xff]
        %v269 = vld [vmem:[%s219 + $0x28] sm:$0xff]
        %v270 = vld [vmem:[%s219 + $0x30] sm:$0xff]
        %v271 = vld [vmem:[%s219 + $0x38] sm:$0xff]
        %v272 = vld [vmem:[%s219 + $0x40] sm:$0xff]
        %v273 = vld [vmem:[%s219 + $0x48] sm:$0xff]
        %v274 = vld [vmem:[%s219 + $0x50] sm:$0xff]
        %v275 = vld [vmem:[%s219 + $0x58] sm:$0xff]
        %v276 = vld [vmem:[%s219 + $0x60] sm:$0xff]
        %v277 = vld [vmem:[%s219 + $0x68] sm:$0xff]
        %v278 = vld [vmem:[%s219 + $0x70] sm:$0xff]
        %v279 = vld [vmem:[%s219 + $0x78] sm:$0xff]
        %v280 = vld [vmem:[%s219 + $0x80] sm:$0xff]
        %v281 = vld [vmem:[%s219 + $0x88] sm:$0xff]
        %v282 = vld [vmem:[%s219 + $0x90] sm:$0xff]
        %v283 = vld [vmem:[%s219 + $0x98] sm:$0xff]
        %v284 = vld [vmem:[%s219 + $0xa0] sm:$0xff]
        %v285 = vld [vmem:[%s219 + $0xa8] sm:$0xff]
        %v286 = vld [vmem:[%s219 + $0xb0] sm:$0xff]
        %v287 = vld [vmem:[%s219 + $0xb8] sm:$0xff]
        %v288 = vld [vmem:[%s219 + $0xc0] sm:$0xff]
        %v289 = vld [vmem:[%s219 + $0xc8] sm:$0xff]
        %v290 = vld [vmem:[%s219 + $0xd0] sm:$0xff]
        %v291 = vld [vmem:[%s219 + $0xd8] sm:$0xff]
        %v292 = vld [vmem:[%s219 + $0xe0] sm:$0xff]
        %v293 = vld [vmem:[%s219 + $0xe8] sm:$0xff]
        %v294 = vld [vmem:[%s219 + $0xf0] sm:$0xff]
        %v295 = vld [vmem:[%s219 + $0xf8] sm:$0xff]
        %296 = vmatprep.subr.mxu0 0.0
        %297 = vmatpush1.xpose.msra.mxu0 %v264
        %298 = vmatprep.subr.mxu0 0.0
        %299 = vmatpush1.xpose.msra.mxu0 %v265
        %300 = vmatprep.subr.mxu0 0.0
        %301 = vmatpush1.xpose.msra.mxu0 %v266
        %302 = vmatprep.subr.mxu0 0.0
        %303 = vmatpush1.xpose.msra.mxu0 %v267
        %304 = vmatprep.subr.mxu0 0.0
        %305 = vmatpush1.xpose.msra.mxu0 %v268
        %306 = vmatprep.subr.mxu0 0.0
        %307 = vmatpush1.xpose.msra.mxu0 %v269
        %308 = vmatprep.subr.mxu0 0.0
        %309 = vmatpush1.xpose.msra.mxu0 %v270
        %310 = vmatprep.subr.mxu0 0.0
        %311 = vmatpush1.xpose.msra.mxu0 %v271
        %312 = vmatprep.subr.mxu0 0.0
        %313 = vmatpush1.xpose.msra.mxu0 %v272
        %314 = vmatprep.subr.mxu0 0.0
        %315 = vmatpush1.xpose.msra.mxu0 %v273
        %316 = vmatprep.subr.mxu0 0.0
        %317 = vmatpush1.xpose.msra.mxu0 %v274
        %318 = vmatprep.subr.mxu0 0.0
        %319 = vmatpush1.xpose.msra.mxu0 %v275
        %320 = vmatprep.subr.mxu0 0.0
        %321 = vmatpush1.xpose.msra.mxu0 %v276
        %322 = vmatprep.subr.mxu0 0.0
        %323 = vmatpush1.xpose.msra.mxu0 %v277
        %324 = vmatprep.subr.mxu0 0.0
        %325 = vmatpush1.xpose.msra.mxu0 %v278
        %326 = vmatprep.subr.mxu0 0.0
        %327 = vmatpush1.xpose.msra.mxu0 %v279
        %328 = vmatprep.subr.mxu0 0.0
        %329 = vmatpush1.xpose.msra.mxu0 %v280
        %330 = vmatprep.subr.mxu0 0.0
        %331 = vmatpush1.xpose.msra.mxu0 %v281
        %332 = vmatprep.subr.mxu0 0.0
        %333 = vmatpush1.xpose.msra.mxu0 %v282
        %334 = vmatprep.subr.mxu0 0.0
        %335 = vmatpush1.xpose.msra.mxu0 %v283
        %336 = vmatprep.subr.mxu0 0.0
        %337 = vmatpush1.xpose.msra.mxu0 %v284
        %338 = vmatprep.subr.mxu0 0.0
        %339 = vmatpush1.xpose.msra.mxu0 %v285
        %340 = vmatprep.subr.mxu0 0.0
        %341 = vmatpush1.xpose.msra.mxu0 %v286
        %342 = vmatprep.subr.mxu0 0.0
        %343 = vmatpush1.xpose.msra.mxu0 %v287
        %344 = vmatprep.subr.mxu0 0.0
        %345 = vmatpush1.xpose.msra.mxu0 %v288
        %346 = vmatprep.subr.mxu0 0.0
        %347 = vmatpush1.xpose.msra.mxu0 %v289
        %348 = vmatprep.subr.mxu0 0.0
        %349 = vmatpush1.xpose.msra.mxu0 %v290
        %350 = vmatprep.subr.mxu0 0.0
        %351 = vmatpush1.xpose.msra.mxu0 %v291
        %352 = vmatprep.subr.mxu0 0.0
        %353 = vmatpush1.xpose.msra.mxu0 %v292
        %354 = vmatprep.subr.mxu0 0.0
        %355 = vmatpush1.xpose.msra.mxu0 %v293
        %356 = vmatprep.subr.mxu0 0.0
        %357 = vmatpush1.xpose.msra.mxu0 %v294
        %358 = vmatprep.subr.mxu0 0.0
        %359 = vmatpush1.xpose.msra.mxu0 %v295
        %360 = vmatprep.mubr.f32.mxu0 0.0
        %361 = vmatmul.mubr.f32.gmra.mrb[0].mxu0 %v248
        %v362 = vpop.f32.mrb[0].mxu0
        %v363 = vadd.f32 0.0, %v362
        %v364 = vpop.f32.mrb[0].mxu0
        %v365 = vadd.f32 0.0, %v364
        %366 = vmatprep.mubr.f32.mxu0 0.0
        %367 = vmatmul.mubr.f32.gmra.mrb[0].mxu0 %v249
        %v368 = vpop.f32.mrb[0].mxu0
        %v369 = vadd.f32 0.0, %v368
        %v370 = vpop.f32.mrb[0].mxu0
        %v371 = vadd.f32 0.0, %v370
        %372 = vmatprep.mubr.f32.mxu0 0.0
        %373 = vmatmul.mubr.f32.gmra.mrb[0].mxu0 %v250
        %v374 = vpop.f32.mrb[0].mxu0
        %v375 = vadd.f32 0.0, %v374
        %v376 = vpop.f32.mrb[0].mxu0
        %v377 = vadd.f32 0.0, %v376
        %378 = vmatprep.mubr.f32.mxu0 0.0
        %379 = vmatmul.mubr.f32.gmra.mrb[0].mxu0 %v251
        %v380 = vpop.f32.mrb[0].mxu0
        %v381 = vadd.f32 0.0, %v380
        %v382 = vpop.f32.mrb[0].mxu0
        %v383 = vadd.f32 0.0, %v382
        %384 = vmatprep.mubr.f32.mxu0 0.0
        %385 = vmatmul.mubr.f32.gmra.mrb[0].mxu0 %v252
        %v386 = vpop.f32.mrb[0].mxu0
        %v387 = vadd.f32 0.0, %v386
        %v388 = vpop.f32.mrb[0].mxu0
        %v389 = vadd.f32 0.0, %v388
        %390 = vmatprep.mubr.f32.mxu0 0.0
        %391 = vmatmul.mubr.f32.gmra.mrb[0].mxu0 %v253
        %v392 = vpop.f32.mrb[0].mxu0
        %v393 = vadd.f32 0.0, %v392
        %v394 = vpop.f32.mrb[0].mxu0
        %v395 = vadd.f32 0.0, %v394
        %396 = vmatprep.mubr.f32.mxu0 0.0
        %397 = vmatmul.mubr.f32.gmra.mrb[0].mxu0 %v254
        %v398 = vpop.f32.mrb[0].mxu0
        %v399 = vadd.f32 0.0, %v398
        %v400 = vpop.f32.mrb[0].mxu0
        %v401 = vadd.f32 0.0, %v400
        %402 = vmatprep.mubr.f32.mxu0 0.0
        %403 = vmatmul.mubr.f32.gmra.mrb[0].mxu0 %v255
        %v404 = vpop.f32.mrb[0].mxu0
        %v405 = vadd.f32 0.0, %v404
        %v406 = vpop.f32.mrb[0].mxu0
        %v407 = vadd.f32 0.0, %v406
        %408 = vmatprep.mubr.f32.mxu0 0.0
        %409 = vmatmul.mubr.f32.gmra.mrb[0].mxu0 %v256
        %v410 = vpop.f32.mrb[0].mxu0
        %v411 = vadd.f32 0.0, %v410
        %v412 = vpop.f32.mrb[0].mxu0
        %v413 = vadd.f32 0.0, %v412
        %414 = vmatprep.mubr.f32.mxu0 0.0
        %415 = vmatmul.mubr.f32.gmra.mrb[0].mxu0 %v257
        %v416 = vpop.f32.mrb[0].mxu0
        %v417 = vadd.f32 0.0, %v416
        %v418 = vpop.f32.mrb[0].mxu0
        %v419 = vadd.f32 0.0, %v418
        %420 = vmatprep.mubr.f32.mxu0 0.0
        %421 = vmatmul.mubr.f32.gmra.mrb[0].mxu0 %v258
        %v422 = vpop.f32.mrb[0].mxu0
        %v423 = vadd.f32 0.0, %v422
        %v424 = vpop.f32.mrb[0].mxu0
        %v425 = vadd.f32 0.0, %v424
        %426 = vmatprep.mubr.f32.mxu0 0.0
        %427 = vmatmul.mubr.f32.gmra.mrb[0].mxu0 %v259
        %v428 = vpop.f32.mrb[0].mxu0
        %v429 = vadd.f32 0.0, %v428
        %v430 = vpop.f32.mrb[0].mxu0
        %v431 = vadd.f32 0.0, %v430
        %432 = vmatprep.mubr.f32.mxu0 0.0
        %433 = vmatmul.mubr.f32.gmra.mrb[0].mxu0 %v260
        %v434 = vpop.f32.mrb[0].mxu0
        %v435 = vadd.f32 0.0, %v434
        %v436 = vpop.f32.mrb[0].mxu0
        %v437 = vadd.f32 0.0, %v436
        %438 = vmatprep.mubr.f32.mxu0 0.0
        %439 = vmatmul.mubr.f32.gmra.mrb[0].mxu0 %v261
        %v440 = vpop.f32.mrb[0].mxu0
        %v441 = vadd.f32 0.0, %v440
        %v442 = vpop.f32.mrb[0].mxu0
        %v443 = vadd.f32 0.0, %v442
        %444 = vmatprep.mubr.f32.mxu0 0.0
        %445 = vmatmul.mubr.f32.gmra.mrb[0].mxu0 %v262
        %v446 = vpop.f32.mrb[0].mxu0
        %v447 = vadd.f32 0.0, %v446
        %v448 = vpop.f32.mrb[0].mxu0
        %v449 = vadd.f32 0.0, %v448
        %450 = vmatprep.mubr.f32.mxu0 0.0
        %451 = vmatmul.mubr.f32.gmra.mrb[0].mxu0 %v263
        %v452 = vpop.f32.mrb[0].mxu0
        %v453 = vadd.f32 0.0, %v452
        %v454 = vpop.f32.mrb[0].mxu0
        %v455 = vadd.f32 0.0, %v454
        %456 = vdwg.mxu0
        %v457 = vmul.f32 %v363, 0.5
        %v458 = vmul.f32 %v365, 0.5
        %v459 = vmul.f32 %v369, 0.5
        %v460 = vmul.f32 %v371, 0.5
        %v461 = vmul.f32 %v375, 0.5
        %v462 = vmul.f32 %v377, 0.5
        %v463 = vmul.f32 %v381, 0.5
        %v464 = vmul.f32 %v383, 0.5
        %v465 = vmul.f32 %v387, 0.5
        %v466 = vmul.f32 %v389, 0.5
        %v467 = vmul.f32 %v393, 0.5
        %v468 = vmul.f32 %v395, 0.5
        %v469 = vmul.f32 %v399, 0.5
        %v470 = vmul.f32 %v401, 0.5
        %v471 = vmul.f32 %v405, 0.5
        %v472 = vmul.f32 %v407, 0.5
        %v473 = vmul.f32 %v411, 0.5
        %v474 = vmul.f32 %v413, 0.5
        %v475 = vmul.f32 %v417, 0.5
        %v476 = vmul.f32 %v419, 0.5
        %v477 = vmul.f32 %v423, 0.5
        %v478 = vmul.f32 %v425, 0.5
        %v479 = vmul.f32 %v429, 0.5
        %v480 = vmul.f32 %v431, 0.5
        %v481 = vmul.f32 %v435, 0.5
        %v482 = vmul.f32 %v437, 0.5
        %v483 = vmul.f32 %v441, 0.5
        %v484 = vmul.f32 %v443, 0.5
        %v485 = vmul.f32 %v447, 0.5
        %v486 = vmul.f32 %v449, 0.5
        %v487 = vmul.f32 %v453, 0.5
        %v488 = vmul.f32 %v455, 0.5
        %v489 = vmul.f32 %v363, 0.70710677
        %v490 = vmul.f32 %v365, 0.70710677
        %v491 = vmul.f32 %v369, 0.70710677
        %v492 = vmul.f32 %v371, 0.70710677
        %v493 = vmul.f32 %v375, 0.70710677
        %v494 = vmul.f32 %v377, 0.70710677
        %v495 = vmul.f32 %v381, 0.70710677
        %v496 = vmul.f32 %v383, 0.70710677
        %v497 = vmul.f32 %v387, 0.70710677
        %v498 = vmul.f32 %v389, 0.70710677
        %v499 = vmul.f32 %v393, 0.70710677
        %v500 = vmul.f32 %v395, 0.70710677
        %v501 = vmul.f32 %v399, 0.70710677
        %v502 = vmul.f32 %v401, 0.70710677
        %v503 = vmul.f32 %v405, 0.70710677
        %v504 = vmul.f32 %v407, 0.70710677
        %v505 = vmul.f32 %v411, 0.70710677
        %v506 = vmul.f32 %v413, 0.70710677
        %v507 = vmul.f32 %v417, 0.70710677
        %v508 = vmul.f32 %v419, 0.70710677
        %v509 = vmul.f32 %v423, 0.70710677
        %v510 = vmul.f32 %v425, 0.70710677
        %v511 = vmul.f32 %v429, 0.70710677
        %v512 = vmul.f32 %v431, 0.70710677
        %v513 = vmul.f32 %v435, 0.70710677
        %v514 = vmul.f32 %v437, 0.70710677
        %v515 = vmul.f32 %v441, 0.70710677
        %v516 = vmul.f32 %v443, 0.70710677
        %v517 = vmul.f32 %v447, 0.70710677
        %v518 = vmul.f32 %v449, 0.70710677
        %v519 = vmul.f32 %v453, 0.70710677
        %v520 = vmul.f32 %v455, 0.70710677
        %v521 = verf.f32.pop %v489
        %v522 = verf.f32.pop %v490
        %v523 = verf.f32.pop %v491
        %v524 = verf.f32.pop %v492
        %v525 = verf.f32.pop %v493
        %v526 = verf.f32.pop %v494
        %v527 = verf.f32.pop %v495
        %v528 = verf.f32.pop %v496
        %v529 = verf.f32.pop %v497
        %v530 = verf.f32.pop %v498
        %v531 = verf.f32.pop %v499
        %v532 = verf.f32.pop %v500
        %v533 = verf.f32.pop %v501
        %v534 = verf.f32.pop %v502
        %v535 = verf.f32.pop %v503
        %v536 = verf.f32.pop %v504
        %v537 = verf.f32.pop %v505
        %v538 = verf.f32.pop %v506
        %v539 = verf.f32.pop %v507
        %v540 = verf.f32.pop %v508
        %v541 = verf.f32.pop %v509
        %v542 = verf.f32.pop %v510
        %v543 = verf.f32.pop %v511
        %v544 = verf.f32.pop %v512
        %v545 = verf.f32.pop %v513
        %v546 = verf.f32.pop %v514
        %v547 = verf.f32.pop %v515
        %v548 = verf.f32.pop %v516
        %v549 = verf.f32.pop %v517
        %v550 = verf.f32.pop %v518
        %v551 = verf.f32.pop %v519
        %v552 = verf.f32.pop %v520
        %v553 = vadd.f32 %v521, 1.0
        %v554 = vadd.f32 %v522, 1.0
        %v555 = vadd.f32 %v523, 1.0
        %v556 = vadd.f32 %v524, 1.0
        %v557 = vadd.f32 %v525, 1.0
        %v558 = vadd.f32 %v526, 1.0
        %v559 = vadd.f32 %v527, 1.0
        %v560 = vadd.f32 %v528, 1.0
        %v561 = vadd.f32 %v529, 1.0
        %v562 = vadd.f32 %v530, 1.0
        %v563 = vadd.f32 %v531, 1.0
        %v564 = vadd.f32 %v532, 1.0
        %v565 = vadd.f32 %v533, 1.0
        %v566 = vadd.f32 %v534, 1.0
        %v567 = vadd.f32 %v535, 1.0
        %v568 = vadd.f32 %v536, 1.0
        %v569 = vadd.f32 %v537, 1.0
        %v570 = vadd.f32 %v538, 1.0
        %v571 = vadd.f32 %v539, 1.0
        %v572 = vadd.f32 %v540, 1.0
        %v573 = vadd.f32 %v541, 1.0
        %v574 = vadd.f32 %v542, 1.0
        %v575 = vadd.f32 %v543, 1.0
        %v576 = vadd.f32 %v544, 1.0
        %v577 = vadd.f32 %v545, 1.0
        %v578 = vadd.f32 %v546, 1.0
        %v579 = vadd.f32 %v547, 1.0
        %v580 = vadd.f32 %v548, 1.0
        %v581 = vadd.f32 %v549, 1.0
        %v582 = vadd.f32 %v550, 1.0
        %v583 = vadd.f32 %v551, 1.0
        %v584 = vadd.f32 %v552, 1.0
        %v585 = vmul.f32 %v457, %v553
        %v586 = vmul.f32 %v458, %v554
        %v587 = vmul.f32 %v459, %v555
        %v588 = vmul.f32 %v460, %v556
        %v589 = vmul.f32 %v461, %v557
        %v590 = vmul.f32 %v462, %v558
        %v591 = vmul.f32 %v463, %v559
        %v592 = vmul.f32 %v464, %v560
        %v593 = vmul.f32 %v465, %v561
        %v594 = vmul.f32 %v466, %v562
        %v595 = vmul.f32 %v467, %v563
        %v596 = vmul.f32 %v468, %v564
        %v597 = vmul.f32 %v469, %v565
        %v598 = vmul.f32 %v470, %v566
        %v599 = vmul.f32 %v471, %v567
        %v600 = vmul.f32 %v472, %v568
        %v601 = vmul.f32 %v473, %v569
        %v602 = vmul.f32 %v474, %v570
        %v603 = vmul.f32 %v475, %v571
        %v604 = vmul.f32 %v476, %v572
        %v605 = vmul.f32 %v477, %v573
        %v606 = vmul.f32 %v478, %v574
        %v607 = vmul.f32 %v479, %v575
        %v608 = vmul.f32 %v480, %v576
        %v609 = vmul.f32 %v481, %v577
        %v610 = vmul.f32 %v482, %v578
        %v611 = vmul.f32 %v483, %v579
        %v612 = vmul.f32 %v484, %v580
        %v613 = vmul.f32 %v485, %v581
        %v614 = vmul.f32 %v486, %v582
        %v615 = vmul.f32 %v487, %v583
        %v616 = vmul.f32 %v488, %v584
        %v617 = vld [vmem:[#allocation2] sm:$0xff]
        %v618 = vld [vmem:[#allocation2 + $0x8] sm:$0xff]
        %v619 = vld [vmem:[#allocation2 + $0x10] sm:$0xff]
        %v620 = vld [vmem:[#allocation2 + $0x18] sm:$0xff]
        %v621 = vld [vmem:[#allocation2 + $0x20] sm:$0xff]
        %v622 = vld [vmem:[#allocation2 + $0x28] sm:$0xff]
        %v623 = vld [vmem:[#allocation2 + $0x30] sm:$0xff]
        %v624 = vld [vmem:[#allocation2 + $0x38] sm:$0xff]
        %v625 = vld [vmem:[#allocation2 + $0x40] sm:$0xff]
        %v626 = vld [vmem:[#allocation2 + $0x48] sm:$0xff]
        %v627 = vld [vmem:[#allocation2 + $0x50] sm:$0xff]
        %v628 = vld [vmem:[#allocation2 + $0x58] sm:$0xff]
        %v629 = vld [vmem:[#allocation2 + $0x60] sm:$0xff]
        %v630 = vld [vmem:[#allocation2 + $0x68] sm:$0xff]
        %v631 = vld [vmem:[#allocation2 + $0x70] sm:$0xff]
        %v632 = vld [vmem:[#allocation2 + $0x78] sm:$0xff]
        %v633 = vld [vmem:[%s225] sm:$0xff]
        %v634 = vld [vmem:[%s225 + $0x8] sm:$0xff]
        %v635 = vld [vmem:[%s225 + $0x10] sm:$0xff]
        %v636 = vld [vmem:[%s225 + $0x18] sm:$0xff]
        %v637 = vld [vmem:[%s225 + $0x20] sm:$0xff]
        %v638 = vld [vmem:[%s225 + $0x28] sm:$0xff]
        %v639 = vld [vmem:[%s225 + $0x30] sm:$0xff]
        %v640 = vld [vmem:[%s225 + $0x38] sm:$0xff]
        %v641 = vld [vmem:[%s225 + $0x40] sm:$0xff]
        %v642 = vld [vmem:[%s225 + $0x48] sm:$0xff]
        %v643 = vld [vmem:[%s225 + $0x50] sm:$0xff]
        %v644 = vld [vmem:[%s225 + $0x58] sm:$0xff]
        %v645 = vld [vmem:[%s225 + $0x60] sm:$0xff]
        %v646 = vld [vmem:[%s225 + $0x68] sm:$0xff]
        %v647 = vld [vmem:[%s225 + $0x70] sm:$0xff]
        %v648 = vld [vmem:[%s225 + $0x78] sm:$0xff]
        %v649 = vld [vmem:[%s225 + $0x80] sm:$0xff]
        %v650 = vld [vmem:[%s225 + $0x88] sm:$0xff]
        %v651 = vld [vmem:[%s225 + $0x90] sm:$0xff]
        %v652 = vld [vmem:[%s225 + $0x98] sm:$0xff]
        %v653 = vld [vmem:[%s225 + $0xa0] sm:$0xff]
        %v654 = vld [vmem:[%s225 + $0xa8] sm:$0xff]
        %v655 = vld [vmem:[%s225 + $0xb0] sm:$0xff]
        %v656 = vld [vmem:[%s225 + $0xb8] sm:$0xff]
        %v657 = vld [vmem:[%s225 + $0xc0] sm:$0xff]
        %v658 = vld [vmem:[%s225 + $0xc8] sm:$0xff]
        %v659 = vld [vmem:[%s225 + $0xd0] sm:$0xff]
        %v660 = vld [vmem:[%s225 + $0xd8] sm:$0xff]
        %v661 = vld [vmem:[%s225 + $0xe0] sm:$0xff]
        %v662 = vld [vmem:[%s225 + $0xe8] sm:$0xff]
        %v663 = vld [vmem:[%s225 + $0xf0] sm:$0xff]
        %v664 = vld [vmem:[%s225 + $0xf8] sm:$0xff]
        %665 = vmatprep.subr.mxu0 %v634
        %666 = vmatpush1.xpose.msra.mxu0 %v633
        %667 = vmatprep.subr.mxu0 %v636
        %668 = vmatpush1.xpose.msra.mxu0 %v635
        %669 = vmatprep.subr.mxu0 %v638
        %670 = vmatpush1.xpose.msra.mxu0 %v637
        %671 = vmatprep.subr.mxu0 %v640
        %672 = vmatpush1.xpose.msra.mxu0 %v639
        %673 = vmatprep.subr.mxu0 %v642
        %674 = vmatpush1.xpose.msra.mxu0 %v641
        %675 = vmatprep.subr.mxu0 %v644
        %676 = vmatpush1.xpose.msra.mxu0 %v643
        %677 = vmatprep.subr.mxu0 %v646
        %678 = vmatpush1.xpose.msra.mxu0 %v645
        %679 = vmatprep.subr.mxu0 %v648
        %680 = vmatpush1.xpose.msra.mxu0 %v647
        %681 = vmatprep.subr.mxu0 %v650
        %682 = vmatpush1.xpose.msra.mxu0 %v649
        %683 = vmatprep.subr.mxu0 %v652
        %684 = vmatpush1.xpose.msra.mxu0 %v651
        %685 = vmatprep.subr.mxu0 %v654
        %686 = vmatpush1.xpose.msra.mxu0 %v653
        %687 = vmatprep.subr.mxu0 %v656
        %688 = vmatpush1.xpose.msra.mxu0 %v655
        %689 = vmatprep.subr.mxu0 %v658
        %690 = vmatpush1.xpose.msra.mxu0 %v657
        %691 = vmatprep.subr.mxu0 %v660
        %692 = vmatpush1.xpose.msra.mxu0 %v659
        %693 = vmatprep.subr.mxu0 %v662
        %694 = vmatpush1.xpose.msra.mxu0 %v661
        %695 = vmatprep.subr.mxu0 %v664
        %696 = vmatpush1.xpose.msra.mxu0 %v663
        %697 = vmatprep.subr.mxu0 0.0
        %698 = vmatpush1.xpose.msra.mxu0 0.0
        %699 = vmatprep.subr.mxu0 0.0
        %700 = vmatpush1.xpose.msra.mxu0 0.0
        %701 = vmatprep.subr.mxu0 0.0
        %702 = vmatpush1.xpose.msra.mxu0 0.0
        %703 = vmatprep.subr.mxu0 0.0
        %704 = vmatpush1.xpose.msra.mxu0 0.0
        %705 = vmatprep.subr.mxu0 0.0
        %706 = vmatpush1.xpose.msra.mxu0 0.0
        %707 = vmatprep.subr.mxu0 0.0
        %708 = vmatpush1.xpose.msra.mxu0 0.0
        %709 = vmatprep.subr.mxu0 0.0
        %710 = vmatpush1.xpose.msra.mxu0 0.0
        %711 = vmatprep.subr.mxu0 0.0
        %712 = vmatpush1.xpose.msra.mxu0 0.0
        %713 = vmatprep.subr.mxu0 0.0
        %714 = vmatpush1.xpose.msra.mxu0 0.0
        %715 = vmatprep.subr.mxu0 0.0
        %716 = vmatpush1.xpose.msra.mxu0 0.0
        %717 = vmatprep.subr.mxu0 0.0
        %718 = vmatpush1.xpose.msra.mxu0 0.0
        %719 = vmatprep.subr.mxu0 0.0
        %720 = vmatpush1.xpose.msra.mxu0 0.0
        %721 = vmatprep.subr.mxu0 0.0
        %722 = vmatpush1.xpose.msra.mxu0 0.0
        %723 = vmatprep.subr.mxu0 0.0
        %724 = vmatpush1.xpose.msra.mxu0 0.0
        %725 = vmatprep.subr.mxu0 0.0
        %726 = vmatpush1.xpose.msra.mxu0 0.0
        %727 = vmatprep.subr.mxu0 0.0
        %728 = vmatpush1.xpose.msra.mxu0 0.0
        %729 = vmatprep.mubr.f32.mxu0 %v586
        %730 = vmatmul.mubr.f32.gmra.mrb[0].mxu0 %v585
        %v731 = vpop.f32.mrb[0].mxu0
        %v732 = vadd.f32 0.0, %v731
        %v733 = vpop.f32.mrb[0].mxu0
        %734 = vmatprep.mubr.f32.mxu0 %v588
        %735 = vmatmul.mubr.f32.gmra.mrb[0].mxu0 %v587
        %v736 = vpop.f32.mrb[0].mxu0
        %v737 = vadd.f32 0.0, %v736
        %v738 = vpop.f32.mrb[0].mxu0
        %739 = vmatprep.mubr.f32.mxu0 %v590
        %740 = vmatmul.mubr.f32.gmra.mrb[0].mxu0 %v589
        %v741 = vpop.f32.mrb[0].mxu0
        %v742 = vadd.f32 0.0, %v741
        %v743 = vpop.f32.mrb[0].mxu0
        %744 = vmatprep.mubr.f32.mxu0 %v592
        %745 = vmatmul.mubr.f32.gmra.mrb[0].mxu0 %v591
        %v746 = vpop.f32.mrb[0].mxu0
        %v747 = vadd.f32 0.0, %v746
        %v748 = vpop.f32.mrb[0].mxu0
        %749 = vmatprep.mubr.f32.mxu0 %v594
        %750 = vmatmul.mubr.f32.gmra.mrb[0].mxu0 %v593
        %v751 = vpop.f32.mrb[0].mxu0
        %v752 = vadd.f32 0.0, %v751
        %v753 = vpop.f32.mrb[0].mxu0
        %754 = vmatprep.mubr.f32.mxu0 %v596
        %755 = vmatmul.mubr.f32.gmra.mrb[0].mxu0 %v595
        %v756 = vpop.f32.mrb[0].mxu0
        %v757 = vadd.f32 0.0, %v756
        %v758 = vpop.f32.mrb[0].mxu0
        %759 = vmatprep.mubr.f32.mxu0 %v598
        %760 = vmatmul.mubr.f32.gmra.mrb[0].mxu0 %v597
        %v761 = vpop.f32.mrb[0].mxu0
        %v762 = vadd.f32 0.0, %v761
        %v763 = vpop.f32.mrb[0].mxu0
        %764 = vmatprep.mubr.f32.mxu0 %v600
        %765 = vmatmul.mubr.f32.gmra.mrb[0].mxu0 %v599
        %v766 = vpop.f32.mrb[0].mxu0
        %v767 = vadd.f32 0.0, %v766
        %v768 = vpop.f32.mrb[0].mxu0
        %769 = vmatprep.mubr.f32.mxu0 %v602
        %770 = vmatmul.mubr.f32.gmra.mrb[0].mxu0 %v601
        %v771 = vpop.f32.mrb[0].mxu0
        %v772 = vadd.f32 0.0, %v771
        %v773 = vpop.f32.mrb[0].mxu0
        %774 = vmatprep.mubr.f32.mxu0 %v604
        %775 = vmatmul.mubr.f32.gmra.mrb[0].mxu0 %v603
        %v776 = vpop.f32.mrb[0].mxu0
        %v777 = vadd.f32 0.0, %v776
        %v778 = vpop.f32.mrb[0].mxu0
        %779 = vmatprep.mubr.f32.mxu0 %v606
        %780 = vmatmul.mubr.f32.gmra.mrb[0].mxu0 %v605
        %v781 = vpop.f32.mrb[0].mxu0
        %v782 = vadd.f32 0.0, %v781
        %v783 = vpop.f32.mrb[0].mxu0
        %784 = vmatprep.mubr.f32.mxu0 %v608
        %785 = vmatmul.mubr.f32.gmra.mrb[0].mxu0 %v607
        %v786 = vpop.f32.mrb[0].mxu0
        %v787 = vadd.f32 0.0, %v786
        %v788 = vpop.f32.mrb[0].mxu0
        %789 = vmatprep.mubr.f32.mxu0 %v610
        %790 = vmatmul.mubr.f32.gmra.mrb[0].mxu0 %v609
        %v791 = vpop.f32.mrb[0].mxu0
        %v792 = vadd.f32 0.0, %v791
        %v793 = vpop.f32.mrb[0].mxu0
        %794 = vmatprep.mubr.f32.mxu0 %v612
        %795 = vmatmul.mubr.f32.gmra.mrb[0].mxu0 %v611
        %v796 = vpop.f32.mrb[0].mxu0
        %v797 = vadd.f32 0.0, %v796
        %v798 = vpop.f32.mrb[0].mxu0
        %799 = vmatprep.mubr.f32.mxu0 %v614
        %800 = vmatmul.mubr.f32.gmra.mrb[0].mxu0 %v613
        %v801 = vpop.f32.mrb[0].mxu0
        %v802 = vadd.f32 0.0, %v801
        %v803 = vpop.f32.mrb[0].mxu0
        %804 = vmatprep.mubr.f32.mxu0 %v616
        %805 = vmatmul.mubr.f32.gmra.mrb[0].mxu0 %v615
        %v806 = vpop.f32.mrb[0].mxu0
        %v807 = vadd.f32 0.0, %v806
        %v808 = vpop.f32.mrb[0].mxu0
        %809 = vdwg.mxu0
        %v810 = vadd.f32 %v617, %v732
        %v811 = vadd.f32 %v618, %v737
        %v812 = vadd.f32 %v619, %v742
        %v813 = vadd.f32 %v620, %v747
        %v814 = vadd.f32 %v621, %v752
        %v815 = vadd.f32 %v622, %v757
        %v816 = vadd.f32 %v623, %v762
        %v817 = vadd.f32 %v624, %v767
        %v818 = vadd.f32 %v625, %v772
        %v819 = vadd.f32 %v626, %v777
        %v820 = vadd.f32 %v627, %v782
        %v821 = vadd.f32 %v628, %v787
        %v822 = vadd.f32 %v629, %v792
        %v823 = vadd.f32 %v630, %v797
        %v824 = vadd.f32 %v631, %v802
        %v825 = vadd.f32 %v632, %v807
        %826 = vst [vmem:[#allocation2] sm:$0xff] %v810
        %827 = vst [vmem:[#allocation2 + $0x8] sm:$0xff] %v811
        %828 = vst [vmem:[#allocation2 + $0x10] sm:$0xff] %v812
        %829 = vst [vmem:[#allocation2 + $0x18] sm:$0xff] %v813
        %830 = vst [vmem:[#allocation2 + $0x20] sm:$0xff] %v814
        %831 = vst [vmem:[#allocation2 + $0x28] sm:$0xff] %v815
        %832 = vst [vmem:[#allocation2 + $0x30] sm:$0xff] %v816
        %833 = vst [vmem:[#allocation2 + $0x38] sm:$0xff] %v817
        %834 = vst [vmem:[#allocation2 + $0x40] sm:$0xff] %v818
        %835 = vst [vmem:[#allocation2 + $0x48] sm:$0xff] %v819
        %836 = vst [vmem:[#allocation2 + $0x50] sm:$0xff] %v820
        %837 = vst [vmem:[#allocation2 + $0x58] sm:$0xff] %v821
        %838 = vst [vmem:[#allocation2 + $0x60] sm:$0xff] %v822
        %839 = vst [vmem:[#allocation2 + $0x68] sm:$0xff] %v823
        %840 = vst [vmem:[#allocation2 + $0x70] sm:$0xff] %v824
        %841 = vst [vmem:[#allocation2 + $0x78] sm:$0xff] %v825
        // Predicated region
        $region37: #{ffn_forward.3} parent=31 // pred_check
          %p842 = pneg %p228
        $region38: #{ffn_forward.3} parent=31 // pred_check_branch
          %844 = sbr.rel (%p842) target = $region40
        $region39: #{ffn_forward.3} parent=31 // pred_region
          %v845 = vld [vmem:[#allocation2] sm:$0xff]
          %v846 = vld [vmem:[#allocation2 + $0x8] sm:$0xff]
          %v847 = vld [vmem:[#allocation2 + $0x10] sm:$0xff]
          %v848 = vld [vmem:[#allocation2 + $0x18] sm:$0xff]
          %v849 = vld [vmem:[#allocation2 + $0x20] sm:$0xff]
          %v850 = vld [vmem:[#allocation2 + $0x28] sm:$0xff]
          %v851 = vld [vmem:[#allocation2 + $0x30] sm:$0xff]
          %v852 = vld [vmem:[#allocation2 + $0x38] sm:$0xff]
          %v853 = vld [vmem:[#allocation2 + $0x40] sm:$0xff]
          %v854 = vld [vmem:[#allocation2 + $0x48] sm:$0xff]
          %v855 = vld [vmem:[#allocation2 + $0x50] sm:$0xff]
          %v856 = vld [vmem:[#allocation2 + $0x58] sm:$0xff]
          %v857 = vld [vmem:[#allocation2 + $0x60] sm:$0xff]
          %v858 = vld [vmem:[#allocation2 + $0x68] sm:$0xff]
          %v859 = vld [vmem:[#allocation2 + $0x70] sm:$0xff]
          %v860 = vld [vmem:[#allocation2 + $0x78] sm:$0xff]
          %861 = vst [vmem:[%s208] sm:$0xff] %v845
          %862 = vst [vmem:[%s208 + $0x8] sm:$0xff] %v846
          %863 = vst [vmem:[%s208 + $0x10] sm:$0xff] %v847
          %864 = vst [vmem:[%s208 + $0x18] sm:$0xff] %v848
          %865 = vst [vmem:[%s208 + $0x20] sm:$0xff] %v849
          %866 = vst [vmem:[%s208 + $0x28] sm:$0xff] %v850
          %867 = vst [vmem:[%s208 + $0x30] sm:$0xff] %v851
          %868 = vst [vmem:[%s208 + $0x38] sm:$0xff] %v852
          %869 = vst [vmem:[%s208 + $0x40] sm:$0xff] %v853
          %870 = vst [vmem:[%s208 + $0x48] sm:$0xff] %v854
          %871 = vst [vmem:[%s208 + $0x50] sm:$0xff] %v855
          %872 = vst [vmem:[%s208 + $0x58] sm:$0xff] %v856
          %873 = vst [vmem:[%s208 + $0x60] sm:$0xff] %v857
          %874 = vst [vmem:[%s208 + $0x68] sm:$0xff] %v858
          %875 = vst [vmem:[%s208 + $0x70] sm:$0xff] %v859
          %876 = vst [vmem:[%s208 + $0x78] sm:$0xff] %v860
        $region40: #{ffn_forward.3} parent=31 // pred_fallthru
          _
        %s877 = sand.u32 %s115, 1
        %s878 = scalar_lea.sflag [#allocation4], %s877
        %s879 = sand.u32 %s115, 1
        %s880 = smul.addr %s879, 128
        %s881 = scalar_lea.vmem [#allocation3], %s880
        // Predicated region
        $region41: #{ffn_forward.3} parent=31 // pred_check
          %p882 = pneg %p125
        $region42: #{ffn_forward.3} parent=31 // pred_check_branch
          %884 = sbr.rel (%p882) target = $region44
        $region43: #{ffn_forward.3} parent=31 // pred_region
          %s885 = smul.u32 16, %s21
          %s887 = ssub.s32 2048, 2048
          %888 = vsyncadd %s878, %s887
          %s889 = smul.addr %s885, 128
          %s890 = scalar_lea.hbm %s3, %s889
          %s891 = sshll.u32 %s881, 4
          %s892 = int_to_ptr.vmem [resolvable:$true] %s891
          %897 = dma.vmem_to_hbm [thread:$0]  %s892, 2048, %s890, %s878, 128, 128, 8
        $region44: #{ffn_forward.3} parent=31 // pred_fallthru
          _
      $region32: #{ffn_forward.3} parent=5 // pred_fallthru
        _
      %p898 = scmp.le.s32.totalorder 2, %s12
      // Predicated region
      $region45: #{ffn_forward.3} parent=5 // pred_check
        %p899 = pneg %p898
      $region46: #{ffn_forward.3} parent=5 // pred_check_branch
        %901 = sbr.rel (%p899) target = $region48
      $region47: #{ffn_forward.3} parent=5 // pred_region
        %s902 = ssub.s32 %s12, 2
        // Predicated region
        $region49: #{ffn_forward.3} parent=47 // pred_check
          %p903 = pneg %p131
        $region50: #{ffn_forward.3} parent=47 // pred_check_branch
          %905 = sbr.rel (%p903) target = $region52
        $region51: #{ffn_forward.3} parent=47 // pred_region
          %s906 = sand.u32 %s116, 1
          %s907 = scalar_lea.sflag [#allocation4], %s906
          %s908 = sand.u32 %s116, 1
          %s909 = smul.addr %s908, 128
          %s910 = scalar_lea.vmem [#allocation3], %s909
          %911 = dma.done %s907, 2048
        $region52: #{ffn_forward.3} parent=47 // pred_fallthru
          _
      $region48: #{ffn_forward.3} parent=5 // pred_fallthru
        _
    $region6: #{ffn_forward.3} parent=1 // loop_footer
      %s16 = sadd.s32 1, %s12
    $region7: #{ffn_forward.3} parent=1 // loop_footer_branch
      %11 = sbr.rel target = $region3
    $region8: #{ffn_forward.3} parent=1 // loop_exit
      _
    %912 = vsyncpa [#allocation4], 1
    %s913 = scalar_lea.sflag [#allocation4], 1
    %914 = vsyncpa %s913, 1

</llo_original>
